<compile_context>
chip_gen: v5e
topology: v5e:2x2
jax: 0.10.0
libtpu: 0.0.40
codegen_flags: <defaults>
</compile_context>

<pallas_src>
import jax
import jax.numpy as jnp
from jax.experimental import pallas as pl
from jax.experimental.pallas import tpu as pltpu


def _mish(z):
    # mish(z) = z * tanh(softplus(z)), numerically-stable softplus
    sp = jnp.where(z > 20.0, z, jnp.log1p(jnp.exp(jnp.minimum(z, 20.0))))
    return z * jnp.tanh(sp)


# ----------------------------------------------------------------------------
# Fused kernel: conv1(s=1) -> conv2(s=2) -> conv3(s=2) -> flatten -> linear
# (one grid step = one batch element; everything stays in VMEM)
# ----------------------------------------------------------------------------
def _fused_kernel(x_ref, w1_ref, w2_ref, w3_ref, sc_ref, sh_ref, wl_ref, bl_ref,
                  o_ref, pad_ref):
    # x_ref   : (1, H, W, C)   one image, NHWC
    # w{1,2,3}: (9, C, C)      3x3 conv weights, tap-major (kh*3+kw, Cin, Cout)
    # sc/sh   : (3, C)         folded BN scale / shift per conv stage
    # wl_ref  : (C, C)         final linear weight (in, out), gain folded in
    # bl_ref  : (1, C)         final linear bias
    # o_ref   : (1, 1, C)      latent for this image
    # pad_ref : (H+2, W+2, C)  VMEM scratch reused as zero-padded input per stage
    C = x_ref.shape[-1]

    def conv_stage(x, w_ref, scale, shift, stride):
        # x: (h, w, C) f32 value -> returns (ho, wo, C) f32 value
        h, w, _ = x.shape
        ho = (h - 1) // stride + 1
        wo = (w - 1) // stride + 1
        # in-kernel zero halo (pad=1): no host-side jnp.pad, no extra HBM copy
        pad_ref[...] = jnp.zeros(pad_ref.shape, pad_ref.dtype)
        pad_ref[1:h + 1, 1:w + 1, :] = x
        xp = pad_ref[0:h + 2, 0:w + 2, :]                      # (h+2, w+2, C)

        acc = jnp.zeros((ho * wo, C), jnp.float32)
        for kh in range(3):
            for kw in range(3):
                if stride == 1:
                    tap = xp[kh:kh + ho, kw:kw + wo, :].reshape(ho * wo, C)
                else:
                    # gather the few strided output positions with static,
                    # contiguous point slices (no strided slicing anywhere)
                    pts = []
                    for oh in range(ho):
                        for ow in range(wo):
                            r = kh + stride * oh
                            c = kw + stride * ow
                            pts.append(xp[r:r + 1, c:c + 1, :].reshape(1, C))
                    tap = pts[0] if len(pts) == 1 else jnp.concatenate(pts, axis=0)
                # one matmul per tap, flat f32 accumulator
                acc = acc + jnp.dot(tap, w_ref[kh * 3 + kw],
                                    preferred_element_type=jnp.float32)
        # folded BatchNorm (eval / running statistics) + mish
        y = acc * scale + shift
        return _mish(y).reshape(ho, wo, C)

    x = x_ref[0].astype(jnp.float32)                           # (H, W, C)
    x = conv_stage(x, w1_ref, sc_ref[0:1, :], sh_ref[0:1, :], 1)
    x = conv_stage(x, w2_ref, sc_ref[1:2, :], sh_ref[1:2, :], 2)
    x = conv_stage(x, w3_ref, sc_ref[2:3, :], sh_ref[2:3, :], 2)

    # final feature map is 1x1 -> flatten == PyTorch x.view(-1, z_dims)
    z = x.reshape(1, C)
    out = jnp.dot(z, wl_ref[...], preferred_element_type=jnp.float32) + bl_ref[...]
    o_ref[...] = out.reshape(1, 1, C).astype(o_ref.dtype)


# ----------------------------------------------------------------------------
# Full module forward (wrapper: transpose + pack params + single pallas_call)
# ----------------------------------------------------------------------------
def down_featmap_to_latent(x_nchw, params):
    N, C, H, W = x_nchw.shape
    # spatial sizes through the stride-(1,2,2) stack; must end at 1x1 so that
    # the PyTorch x.view(-1, z_dims) is a pure flatten
    h2, w2 = (H - 1) // 2 + 1, (W - 1) // 2 + 1
    h3, w3 = (h2 - 1) // 2 + 1, (w2 - 1) // 2 + 1
    assert h3 == 1 and w3 == 1, "DownFeatMapToLatent expects spatial dims <= 4"

    x = jnp.transpose(x_nchw, (0, 2, 3, 1))                    # NCHW -> NHWC

    convs = params["convs"]
    w1 = convs[0]["w"].reshape(9, C, C)                        # HWIO -> (tap, Cin, Cout)
    w2 = convs[1]["w"].reshape(9, C, C)
    w3 = convs[2]["w"].reshape(9, C, C)
    sc = jnp.stack([p["scale"] for p in convs])                # (3, C)
    sh = jnp.stack([p["shift"] for p in convs])                # (3, C)
    wl = params["linear"]["w_io"]                              # (C, C), gain folded
    bl = params["linear"]["b"].reshape(1, C)

    out = pl.pallas_call(
        _fused_kernel,
        out_shape=jax.ShapeDtypeStruct((N, 1, C), x.dtype),
        grid=(N,),
        in_specs=[
            pl.BlockSpec((1, H, W, C), lambda n: (n, 0, 0, 0)),
            pl.BlockSpec((9, C, C), lambda n: (0, 0, 0)),
            pl.BlockSpec((9, C, C), lambda n: (0, 0, 0)),
            pl.BlockSpec((9, C, C), lambda n: (0, 0, 0)),
            pl.BlockSpec((3, C), lambda n: (0, 0)),
            pl.BlockSpec((3, C), lambda n: (0, 0)),
            pl.BlockSpec((C, C), lambda n: (0, 0)),
            pl.BlockSpec((1, C), lambda n: (0, 0)),
        ],
        out_specs=pl.BlockSpec((1, 1, C), lambda n: (n, 0, 0)),
        scratch_shapes=[pltpu.VMEM((H + 2, W + 2, C), jnp.float32)],
        compiler_params=pltpu.CompilerParams(dimension_semantics=("parallel",)),
    )(x, w1, w2, w3, sc, sh, wl, bl)
    return out.reshape(N, C)


# ----------------------------------------------------------------------------
# Deterministic parameter init (synthetic; mirrors module __init__ shapes)
# ----------------------------------------------------------------------------
def init_params(key, z_dims):
    eps = 1e-5
    params = {"convs": [], "linear": {}}
    for i in range(3):
        k = jax.random.fold_in(key, i)
        kw_, kg, kb, km, kv = jax.random.split(k, 5)
        # conv weight HWIO; conv bias absent (norm='batch')
        w = jax.random.normal(kw_, (3, 3, z_dims, z_dims), jnp.float32) / jnp.sqrt(
            9.0 * z_dims
        )
        gamma = 1.0 + 0.2 * jax.random.uniform(kg, (z_dims,), jnp.float32) - 0.1
        beta = 0.05 * jax.random.normal(kb, (z_dims,), jnp.float32)
        mean = 0.05 * jax.random.normal(km, (z_dims,), jnp.float32)
        var = 0.8 + 0.4 * jax.random.uniform(kv, (z_dims,), jnp.float32)
        scale = gamma / jnp.sqrt(var + eps)
        shift = beta - mean * scale
        params["convs"].append({"w": w, "scale": scale, "shift": shift})
    # FullyConnectedLayer: weight ~ randn(out,in), gain = lr_mult/sqrt(in), bias 0
    kl = jax.random.fold_in(key, 100)
    w_oi = jax.random.normal(kl, (z_dims, z_dims), jnp.float32)
    gain = 1.0 / jnp.sqrt(jnp.float32(z_dims))
    params["linear"]["w_io"] = (w_oi * gain).T                 # (in, out)
    params["linear"]["b"] = jnp.zeros((z_dims,), jnp.float32)
    return params


# ----------------------------------------------------------------------------
# Pure-JAX reference (correctness sanity check)
# ----------------------------------------------------------------------------
def reference(x_nchw, params):
    x = jnp.transpose(x_nchw, (0, 2, 3, 1))
    for p, s in zip(params["convs"], (1, 2, 2)):
        y = jax.lax.conv_general_dilated(
            x, p["w"], window_strides=(s, s), padding=((1, 1), (1, 1)),
            dimension_numbers=("NHWC", "HWIO", "NHWC"),
        )
        x = _mish(y * p["scale"] + p["shift"])
    z = x.reshape(x.shape[0], -1)
    return z @ params["linear"]["w_io"] + params["linear"]["b"]


if __name__ == "__main__":
    # TODO(synk): BatchNorm uses fixed (running) statistics folded into per-channel
    # scale/shift; PyTorch training-mode batch statistics are not modeled.
    key = jax.random.PRNGKey(0)
    z_dims = 32
    N, H, W = 2, 4, 4  # 4 -> 4 -> 2 -> 1, final feature map is 1x1 as the module implies
    x = jax.random.normal(jax.random.fold_in(key, 999), (N, z_dims, H, W), jnp.float32)
    params = init_params(key, z_dims)

    out = down_featmap_to_latent(x, params)
    jax.block_until_ready(out)

    assert out.shape == (N, z_dims), out.shape
    ref = reference(x, params)
    assert jnp.allclose(out, ref, atol=1e-3, rtol=1e-3), (
        float(jnp.max(jnp.abs(out - ref)))
    )
    print("KERNEL_OK")
</pallas_src>

<mosaic_0001>
module attributes {stable_mosaic.version = 11 : i64} {
  func.func @_fused_kernel(%arg0: i32, %arg1: memref<1x4x4x32xf32, #tpu.memory_space<vmem>>, %arg2: memref<9x32x32xf32, #tpu.memory_space<vmem>>, %arg3: memref<9x32x32xf32, #tpu.memory_space<vmem>>, %arg4: memref<9x32x32xf32, #tpu.memory_space<vmem>>, %arg5: memref<3x32xf32, #tpu.memory_space<vmem>>, %arg6: memref<3x32xf32, #tpu.memory_space<vmem>>, %arg7: memref<32x32xf32, #tpu.memory_space<vmem>>, %arg8: memref<1x32xf32, #tpu.memory_space<vmem>>, %arg9: memref<1x1x32xf32, #tpu.memory_space<vmem>>, %arg10: memref<6x6x32xf32, #tpu.memory_space<vmem>>) attributes {dimension_semantics = [#tpu.dimension_semantics<parallel>], iteration_bounds = array<i64: 2>, scalar_prefetch = 0 : i64, scratch_operands = 1 : i64, tpu.core_type = #tpu.core_type<tc>, window_params = [{transform_indices = @transform_0, window_bounds = array<i64: 1, 4, 4, 32>}, {pipeline_mode = #tpu.pipeline_mode<synchronous>, transform_indices = @transform_1, window_bounds = array<i64: 9, 32, 32>}, {pipeline_mode = #tpu.pipeline_mode<synchronous>, transform_indices = @transform_2, window_bounds = array<i64: 9, 32, 32>}, {pipeline_mode = #tpu.pipeline_mode<synchronous>, transform_indices = @transform_3, window_bounds = array<i64: 9, 32, 32>}, {pipeline_mode = #tpu.pipeline_mode<synchronous>, transform_indices = @transform_4, window_bounds = array<i64: 3, 32>}, {pipeline_mode = #tpu.pipeline_mode<synchronous>, transform_indices = @transform_5, window_bounds = array<i64: 3, 32>}, {pipeline_mode = #tpu.pipeline_mode<synchronous>, transform_indices = @transform_6, window_bounds = array<i64: 32, 32>}, {pipeline_mode = #tpu.pipeline_mode<synchronous>, transform_indices = @transform_7, window_bounds = array<i64: 1, 32>}, {transform_indices = @transform_8, window_bounds = array<i64: 1, 1, 32>}]} {
    %c0 = arith.constant 0 : index
    %c0_0 = arith.constant 0 : index
    %c0_1 = arith.constant 0 : index
    %c0_2 = arith.constant 0 : index
    %0 = vector.load %arg1[%c0, %c0_0, %c0_1, %c0_2] : memref<1x4x4x32xf32, #tpu.memory_space<vmem>>, vector<1x4x4x32xf32>
    %1 = vector.shape_cast %0 : vector<1x4x4x32xf32> to vector<4x4x32xf32>
    %c0_3 = arith.constant 0 : index
    %c0_4 = arith.constant 0 : index
    %2 = vector.load %arg5[%c0_3, %c0_4] : memref<3x32xf32, #tpu.memory_space<vmem>>, vector<1x32xf32>
    %c0_5 = arith.constant 0 : index
    %c0_6 = arith.constant 0 : index
    %3 = vector.load %arg6[%c0_5, %c0_6] : memref<3x32xf32, #tpu.memory_space<vmem>>, vector<1x32xf32>
    %cst = arith.constant 0.000000e+00 : f32
    %4 = vector.broadcast %cst : f32 to vector<6x6x32xf32>
    %c0_7 = arith.constant 0 : index
    %c0_8 = arith.constant 0 : index
    %c0_9 = arith.constant 0 : index
    %5 = vector.load %arg10[%c0_7, %c0_8, %c0_9] : memref<6x6x32xf32, #tpu.memory_space<vmem>>, vector<6x6x32xf32>
    tpu.vector_store %arg10[%c0_7, %c0_8, %c0_9], %4 {strides = array<i32>} : memref<6x6x32xf32, #tpu.memory_space<vmem>>, vector<6x6x32xf32>,
    %c1 = arith.constant 1 : index
    %c1_10 = arith.constant 1 : index
    %c0_11 = arith.constant 0 : index
    %6 = vector.load %arg10[%c1, %c1_10, %c0_11] : memref<6x6x32xf32, #tpu.memory_space<vmem>>, vector<4x4x32xf32>
    tpu.vector_store %arg10[%c1, %c1_10, %c0_11], %1 {strides = array<i32>} : memref<6x6x32xf32, #tpu.memory_space<vmem>>, vector<4x4x32xf32>,
    %c0_12 = arith.constant 0 : index
    %c0_13 = arith.constant 0 : index
    %c0_14 = arith.constant 0 : index
    %7 = vector.load %arg10[%c0_12, %c0_13, %c0_14] : memref<6x6x32xf32, #tpu.memory_space<vmem>>, vector<6x6x32xf32>
    %cst_15 = arith.constant 0.000000e+00 : f32
    %8 = vector.broadcast %cst_15 : f32 to vector<16x32xf32>
    %9 = vector.extract_strided_slice %7 {offsets = [0, 0, 0], sizes = [4, 4, 32], strides = [1, 1, 1]} : vector<6x6x32xf32> to vector<4x4x32xf32>
    %10 = vector.shape_cast %9 : vector<4x4x32xf32> to vector<16x32xf32>
    %c0_16 = arith.constant 0 : index
    %c0_17 = arith.constant 0 : index
    %c0_18 = arith.constant 0 : index
    %11 = vector.load %arg2[%c0_16, %c0_17, %c0_18] : memref<9x32x32xf32, #tpu.memory_space<vmem>>, vector<1x32x32xf32>
    %12 = vector.shape_cast %11 : vector<1x32x32xf32> to vector<32x32xf32>
    %cst_19 = arith.constant dense<0.000000e+00> : vector<16x32xf32>
    %13 = tpu.matmul %10, %12, %cst_19 {dimension_numbers = #tpu.dot_dimension_numbers<[1], [0], [0], [1], [0, 0, 1, 1], [], []>} : vector<16x32xf32>, vector<32x32xf32>, vector<16x32xf32> -> vector<16x32xf32>
    %14 = arith.addf %8, %13 : vector<16x32xf32>
    %15 = vector.extract_strided_slice %7 {offsets = [0, 1, 0], sizes = [4, 4, 32], strides = [1, 1, 1]} : vector<6x6x32xf32> to vector<4x4x32xf32>
    %16 = vector.shape_cast %15 : vector<4x4x32xf32> to vector<16x32xf32>
    %c1_20 = arith.constant 1 : index
    %c0_21 = arith.constant 0 : index
    %c0_22 = arith.constant 0 : index
    %17 = vector.load %arg2[%c1_20, %c0_21, %c0_22] : memref<9x32x32xf32, #tpu.memory_space<vmem>>, vector<1x32x32xf32>
    %18 = vector.shape_cast %17 : vector<1x32x32xf32> to vector<32x32xf32>
    %cst_23 = arith.constant dense<0.000000e+00> : vector<16x32xf32>
    %19 = tpu.matmul %16, %18, %cst_23 {dimension_numbers = #tpu.dot_dimension_numbers<[1], [0], [0], [1], [0, 0, 1, 1], [], []>} : vector<16x32xf32>, vector<32x32xf32>, vector<16x32xf32> -> vector<16x32xf32>
    %20 = arith.addf %14, %19 : vector<16x32xf32>
    %21 = vector.extract_strided_slice %7 {offsets = [0, 2, 0], sizes = [4, 4, 32], strides = [1, 1, 1]} : vector<6x6x32xf32> to vector<4x4x32xf32>
    %22 = vector.shape_cast %21 : vector<4x4x32xf32> to vector<16x32xf32>
    %c2 = arith.constant 2 : index
    %c0_24 = arith.constant 0 : index
    %c0_25 = arith.constant 0 : index
    %23 = vector.load %arg2[%c2, %c0_24, %c0_25] : memref<9x32x32xf32, #tpu.memory_space<vmem>>, vector<1x32x32xf32>
    %24 = vector.shape_cast %23 : vector<1x32x32xf32> to vector<32x32xf32>
    %cst_26 = arith.constant dense<0.000000e+00> : vector<16x32xf32>
    %25 = tpu.matmul %22, %24, %cst_26 {dimension_numbers = #tpu.dot_dimension_numbers<[1], [0], [0], [1], [0, 0, 1, 1], [], []>} : vector<16x32xf32>, vector<32x32xf32>, vector<16x32xf32> -> vector<16x32xf32>
    %26 = arith.addf %20, %25 : vector<16x32xf32>
    %27 = vector.extract_strided_slice %7 {offsets = [1, 0, 0], sizes = [4, 4, 32], strides = [1, 1, 1]} : vector<6x6x32xf32> to vector<4x4x32xf32>
    %28 = vector.shape_cast %27 : vector<4x4x32xf32> to vector<16x32xf32>
    %c3 = arith.constant 3 : index
    %c0_27 = arith.constant 0 : index
    %c0_28 = arith.constant 0 : index
    %29 = vector.load %arg2[%c3, %c0_27, %c0_28] : memref<9x32x32xf32, #tpu.memory_space<vmem>>, vector<1x32x32xf32>
    %30 = vector.shape_cast %29 : vector<1x32x32xf32> to vector<32x32xf32>
    %cst_29 = arith.constant dense<0.000000e+00> : vector<16x32xf32>
    %31 = tpu.matmul %28, %30, %cst_29 {dimension_numbers = #tpu.dot_dimension_numbers<[1], [0], [0], [1], [0, 0, 1, 1], [], []>} : vector<16x32xf32>, vector<32x32xf32>, vector<16x32xf32> -> vector<16x32xf32>
    %32 = arith.addf %26, %31 : vector<16x32xf32>
    %33 = vector.extract_strided_slice %7 {offsets = [1, 1, 0], sizes = [4, 4, 32], strides = [1, 1, 1]} : vector<6x6x32xf32> to vector<4x4x32xf32>
    %34 = vector.shape_cast %33 : vector<4x4x32xf32> to vector<16x32xf32>
    %c4 = arith.constant 4 : index
    %c0_30 = arith.constant 0 : index
    %c0_31 = arith.constant 0 : index
    %35 = vector.load %arg2[%c4, %c0_30, %c0_31] : memref<9x32x32xf32, #tpu.memory_space<vmem>>, vector<1x32x32xf32>
    %36 = vector.shape_cast %35 : vector<1x32x32xf32> to vector<32x32xf32>
    %cst_32 = arith.constant dense<0.000000e+00> : vector<16x32xf32>
    %37 = tpu.matmul %34, %36, %cst_32 {dimension_numbers = #tpu.dot_dimension_numbers<[1], [0], [0], [1], [0, 0, 1, 1], [], []>} : vector<16x32xf32>, vector<32x32xf32>, vector<16x32xf32> -> vector<16x32xf32>
    %38 = arith.addf %32, %37 : vector<16x32xf32>
    %39 = vector.extract_strided_slice %7 {offsets = [1, 2, 0], sizes = [4, 4, 32], strides = [1, 1, 1]} : vector<6x6x32xf32> to vector<4x4x32xf32>
    %40 = vector.shape_cast %39 : vector<4x4x32xf32> to vector<16x32xf32>
    %c5 = arith.constant 5 : index
    %c0_33 = arith.constant 0 : index
    %c0_34 = arith.constant 0 : index
    %41 = vector.load %arg2[%c5, %c0_33, %c0_34] : memref<9x32x32xf32, #tpu.memory_space<vmem>>, vector<1x32x32xf32>
    %42 = vector.shape_cast %41 : vector<1x32x32xf32> to vector<32x32xf32>
    %cst_35 = arith.constant dense<0.000000e+00> : vector<16x32xf32>
    %43 = tpu.matmul %40, %42, %cst_35 {dimension_numbers = #tpu.dot_dimension_numbers<[1], [0], [0], [1], [0, 0, 1, 1], [], []>} : vector<16x32xf32>, vector<32x32xf32>, vector<16x32xf32> -> vector<16x32xf32>
    %44 = arith.addf %38, %43 : vector<16x32xf32>
    %45 = vector.extract_strided_slice %7 {offsets = [2, 0, 0], sizes = [4, 4, 32], strides = [1, 1, 1]} : vector<6x6x32xf32> to vector<4x4x32xf32>
    %46 = vector.shape_cast %45 : vector<4x4x32xf32> to vector<16x32xf32>
    %c6 = arith.constant 6 : index
    %c0_36 = arith.constant 0 : index
    %c0_37 = arith.constant 0 : index
    %47 = vector.load %arg2[%c6, %c0_36, %c0_37] : memref<9x32x32xf32, #tpu.memory_space<vmem>>, vector<1x32x32xf32>
    %48 = vector.shape_cast %47 : vector<1x32x32xf32> to vector<32x32xf32>
    %cst_38 = arith.constant dense<0.000000e+00> : vector<16x32xf32>
    %49 = tpu.matmul %46, %48, %cst_38 {dimension_numbers = #tpu.dot_dimension_numbers<[1], [0], [0], [1], [0, 0, 1, 1], [], []>} : vector<16x32xf32>, vector<32x32xf32>, vector<16x32xf32> -> vector<16x32xf32>
    %50 = arith.addf %44, %49 : vector<16x32xf32>
    %51 = vector.extract_strided_slice %7 {offsets = [2, 1, 0], sizes = [4, 4, 32], strides = [1, 1, 1]} : vector<6x6x32xf32> to vector<4x4x32xf32>
    %52 = vector.shape_cast %51 : vector<4x4x32xf32> to vector<16x32xf32>
    %c7 = arith.constant 7 : index
    %c0_39 = arith.constant 0 : index
    %c0_40 = arith.constant 0 : index
    %53 = vector.load %arg2[%c7, %c0_39, %c0_40] : memref<9x32x32xf32, #tpu.memory_space<vmem>>, vector<1x32x32xf32>
    %54 = vector.shape_cast %53 : vector<1x32x32xf32> to vector<32x32xf32>
    %cst_41 = arith.constant dense<0.000000e+00> : vector<16x32xf32>
    %55 = tpu.matmul %52, %54, %cst_41 {dimension_numbers = #tpu.dot_dimension_numbers<[1], [0], [0], [1], [0, 0, 1, 1], [], []>} : vector<16x32xf32>, vector<32x32xf32>, vector<16x32xf32> -> vector<16x32xf32>
    %56 = arith.addf %50, %55 : vector<16x32xf32>
    %57 = vector.extract_strided_slice %7 {offsets = [2, 2, 0], sizes = [4, 4, 32], strides = [1, 1, 1]} : vector<6x6x32xf32> to vector<4x4x32xf32>
    %58 = vector.shape_cast %57 : vector<4x4x32xf32> to vector<16x32xf32>
    %c8 = arith.constant 8 : index
    %c0_42 = arith.constant 0 : index
    %c0_43 = arith.constant 0 : index
    %59 = vector.load %arg2[%c8, %c0_42, %c0_43] : memref<9x32x32xf32, #tpu.memory_space<vmem>>, vector<1x32x32xf32>
    %60 = vector.shape_cast %59 : vector<1x32x32xf32> to vector<32x32xf32>
    %cst_44 = arith.constant dense<0.000000e+00> : vector<16x32xf32>
    %61 = tpu.matmul %58, %60, %cst_44 {dimension_numbers = #tpu.dot_dimension_numbers<[1], [0], [0], [1], [0, 0, 1, 1], [], []>} : vector<16x32xf32>, vector<32x32xf32>, vector<16x32xf32> -> vector<16x32xf32>
    %62 = arith.addf %56, %61 : vector<16x32xf32>
    %63 = vector.broadcast %2 : vector<1x32xf32> to vector<16x32xf32>
    %64 = arith.mulf %62, %63 : vector<16x32xf32>
    %65 = vector.broadcast %3 : vector<1x32xf32> to vector<16x32xf32>
    %66 = arith.addf %64, %65 : vector<16x32xf32>
    %cst_45 = arith.constant 2.000000e+01 : f32
    %67 = vector.broadcast %cst_45 : f32 to vector<16x32xf32>
    %68 = arith.cmpf ogt, %66, %67 : vector<16x32xf32>
    %cst_46 = arith.constant 2.000000e+01 : f32
    %69 = vector.broadcast %cst_46 : f32 to vector<16x32xf32>
    %70 = arith.minimumf %66, %69 : vector<16x32xf32>
    %71 = math.exp %70 : vector<16x32xf32>
    %72 = math.log1p %71 : vector<16x32xf32>
    %73 = arith.select %68, %66, %72 : vector<16x32xi1>, vector<16x32xf32>
    %74 = math.tanh %73 : vector<16x32xf32>
    %75 = arith.mulf %66, %74 : vector<16x32xf32>
    %76 = vector.shape_cast %75 : vector<16x32xf32> to vector<4x4x32xf32>
    %c1_47 = arith.constant 1 : index
    %c0_48 = arith.constant 0 : index
    %77 = vector.load %arg5[%c1_47, %c0_48] : memref<3x32xf32, #tpu.memory_space<vmem>>, vector<1x32xf32>
    %c1_49 = arith.constant 1 : index
    %c0_50 = arith.constant 0 : index
    %78 = vector.load %arg6[%c1_49, %c0_50] : memref<3x32xf32, #tpu.memory_space<vmem>>, vector<1x32xf32>
    %cst_51 = arith.constant 0.000000e+00 : f32
    %79 = vector.broadcast %cst_51 : f32 to vector<6x6x32xf32>
    %c0_52 = arith.constant 0 : index
    %c0_53 = arith.constant 0 : index
    %c0_54 = arith.constant 0 : index
    %80 = vector.load %arg10[%c0_52, %c0_53, %c0_54] : memref<6x6x32xf32, #tpu.memory_space<vmem>>, vector<6x6x32xf32>
    tpu.vector_store %arg10[%c0_52, %c0_53, %c0_54], %79 {strides = array<i32>} : memref<6x6x32xf32, #tpu.memory_space<vmem>>, vector<6x6x32xf32>,
    %c1_55 = arith.constant 1 : index
    %c1_56 = arith.constant 1 : index
    %c0_57 = arith.constant 0 : index
    %81 = vector.load %arg10[%c1_55, %c1_56, %c0_57] : memref<6x6x32xf32, #tpu.memory_space<vmem>>, vector<4x4x32xf32>
    tpu.vector_store %arg10[%c1_55, %c1_56, %c0_57], %76 {strides = array<i32>} : memref<6x6x32xf32, #tpu.memory_space<vmem>>, vector<4x4x32xf32>,
    %c0_58 = arith.constant 0 : index
    %c0_59 = arith.constant 0 : index
    %c0_60 = arith.constant 0 : index
    %82 = vector.load %arg10[%c0_58, %c0_59, %c0_60] : memref<6x6x32xf32, #tpu.memory_space<vmem>>, vector<6x6x32xf32>
    %cst_61 = arith.constant 0.000000e+00 : f32
    %83 = vector.broadcast %cst_61 : f32 to vector<4x32xf32>
    %84 = vector.extract_strided_slice %82 {offsets = [0, 0, 0], sizes = [1, 1, 32], strides = [1, 1, 1]} : vector<6x6x32xf32> to vector<1x1x32xf32>
    %85 = vector.shape_cast %84 : vector<1x1x32xf32> to vector<1x32xf32>
    %86 = vector.extract_strided_slice %82 {offsets = [0, 2, 0], sizes = [1, 1, 32], strides = [1, 1, 1]} : vector<6x6x32xf32> to vector<1x1x32xf32>
    %87 = vector.shape_cast %86 : vector<1x1x32xf32> to vector<1x32xf32>
    %88 = vector.extract_strided_slice %82 {offsets = [2, 0, 0], sizes = [1, 1, 32], strides = [1, 1, 1]} : vector<6x6x32xf32> to vector<1x1x32xf32>
    %89 = vector.shape_cast %88 : vector<1x1x32xf32> to vector<1x32xf32>
    %90 = vector.extract_strided_slice %82 {offsets = [2, 2, 0], sizes = [1, 1, 32], strides = [1, 1, 1]} : vector<6x6x32xf32> to vector<1x1x32xf32>
    %91 = vector.shape_cast %90 : vector<1x1x32xf32> to vector<1x32xf32>
    %92 = tpu.concatenate %85, %87, %89, %91 in 0 : vector<1x32xf32>, vector<1x32xf32>, vector<1x32xf32>, vector<1x32xf32> -> vector<4x32xf32>
    %c0_62 = arith.constant 0 : index
    %c0_63 = arith.constant 0 : index
    %c0_64 = arith.constant 0 : index
    %93 = vector.load %arg3[%c0_62, %c0_63, %c0_64] : memref<9x32x32xf32, #tpu.memory_space<vmem>>, vector<1x32x32xf32>
    %94 = vector.shape_cast %93 : vector<1x32x32xf32> to vector<32x32xf32>
    %cst_65 = arith.constant dense<0.000000e+00> : vector<4x32xf32>
    %95 = tpu.matmul %92, %94, %cst_65 {dimension_numbers = #tpu.dot_dimension_numbers<[1], [0], [0], [1], [0, 0, 1, 1], [], []>} : vector<4x32xf32>, vector<32x32xf32>, vector<4x32xf32> -> vector<4x32xf32>
    %96 = arith.addf %83, %95 : vector<4x32xf32>
    %97 = vector.extract_strided_slice %82 {offsets = [0, 1, 0], sizes = [1, 1, 32], strides = [1, 1, 1]} : vector<6x6x32xf32> to vector<1x1x32xf32>
    %98 = vector.shape_cast %97 : vector<1x1x32xf32> to vector<1x32xf32>
    %99 = vector.extract_strided_slice %82 {offsets = [0, 3, 0], sizes = [1, 1, 32], strides = [1, 1, 1]} : vector<6x6x32xf32> to vector<1x1x32xf32>
    %100 = vector.shape_cast %99 : vector<1x1x32xf32> to vector<1x32xf32>
    %101 = vector.extract_strided_slice %82 {offsets = [2, 1, 0], sizes = [1, 1, 32], strides = [1, 1, 1]} : vector<6x6x32xf32> to vector<1x1x32xf32>
    %102 = vector.shape_cast %101 : vector<1x1x32xf32> to vector<1x32xf32>
    %103 = vector.extract_strided_slice %82 {offsets = [2, 3, 0], sizes = [1, 1, 32], strides = [1, 1, 1]} : vector<6x6x32xf32> to vector<1x1x32xf32>
    %104 = vector.shape_cast %103 : vector<1x1x32xf32> to vector<1x32xf32>
    %105 = tpu.concatenate %98, %100, %102, %104 in 0 : vector<1x32xf32>, vector<1x32xf32>, vector<1x32xf32>, vector<1x32xf32> -> vector<4x32xf32>
    %c1_66 = arith.constant 1 : index
    %c0_67 = arith.constant 0 : index
    %c0_68 = arith.constant 0 : index
    %106 = vector.load %arg3[%c1_66, %c0_67, %c0_68] : memref<9x32x32xf32, #tpu.memory_space<vmem>>, vector<1x32x32xf32>
    %107 = vector.shape_cast %106 : vector<1x32x32xf32> to vector<32x32xf32>
    %cst_69 = arith.constant dense<0.000000e+00> : vector<4x32xf32>
    %108 = tpu.matmul %105, %107, %cst_69 {dimension_numbers = #tpu.dot_dimension_numbers<[1], [0], [0], [1], [0, 0, 1, 1], [], []>} : vector<4x32xf32>, vector<32x32xf32>, vector<4x32xf32> -> vector<4x32xf32>
    %109 = arith.addf %96, %108 : vector<4x32xf32>
    %110 = vector.extract_strided_slice %82 {offsets = [0, 2, 0], sizes = [1, 1, 32], strides = [1, 1, 1]} : vector<6x6x32xf32> to vector<1x1x32xf32>
    %111 = vector.shape_cast %110 : vector<1x1x32xf32> to vector<1x32xf32>
    %112 = vector.extract_strided_slice %82 {offsets = [0, 4, 0], sizes = [1, 1, 32], strides = [1, 1, 1]} : vector<6x6x32xf32> to vector<1x1x32xf32>
    %113 = vector.shape_cast %112 : vector<1x1x32xf32> to vector<1x32xf32>
    %114 = vector.extract_strided_slice %82 {offsets = [2, 2, 0], sizes = [1, 1, 32], strides = [1, 1, 1]} : vector<6x6x32xf32> to vector<1x1x32xf32>
    %115 = vector.shape_cast %114 : vector<1x1x32xf32> to vector<1x32xf32>
    %116 = vector.extract_strided_slice %82 {offsets = [2, 4, 0], sizes = [1, 1, 32], strides = [1, 1, 1]} : vector<6x6x32xf32> to vector<1x1x32xf32>
    %117 = vector.shape_cast %116 : vector<1x1x32xf32> to vector<1x32xf32>
    %118 = tpu.concatenate %111, %113, %115, %117 in 0 : vector<1x32xf32>, vector<1x32xf32>, vector<1x32xf32>, vector<1x32xf32> -> vector<4x32xf32>
    %c2_70 = arith.constant 2 : index
    %c0_71 = arith.constant 0 : index
    %c0_72 = arith.constant 0 : index
    %119 = vector.load %arg3[%c2_70, %c0_71, %c0_72] : memref<9x32x32xf32, #tpu.memory_space<vmem>>, vector<1x32x32xf32>
    %120 = vector.shape_cast %119 : vector<1x32x32xf32> to vector<32x32xf32>
    %cst_73 = arith.constant dense<0.000000e+00> : vector<4x32xf32>
    %121 = tpu.matmul %118, %120, %cst_73 {dimension_numbers = #tpu.dot_dimension_numbers<[1], [0], [0], [1], [0, 0, 1, 1], [], []>} : vector<4x32xf32>, vector<32x32xf32>, vector<4x32xf32> -> vector<4x32xf32>
    %122 = arith.addf %109, %121 : vector<4x32xf32>
    %123 = vector.extract_strided_slice %82 {offsets = [1, 0, 0], sizes = [1, 1, 32], strides = [1, 1, 1]} : vector<6x6x32xf32> to vector<1x1x32xf32>
    %124 = vector.shape_cast %123 : vector<1x1x32xf32> to vector<1x32xf32>
    %125 = vector.extract_strided_slice %82 {offsets = [1, 2, 0], sizes = [1, 1, 32], strides = [1, 1, 1]} : vector<6x6x32xf32> to vector<1x1x32xf32>
    %126 = vector.shape_cast %125 : vector<1x1x32xf32> to vector<1x32xf32>
    %127 = vector.extract_strided_slice %82 {offsets = [3, 0, 0], sizes = [1, 1, 32], strides = [1, 1, 1]} : vector<6x6x32xf32> to vector<1x1x32xf32>
    %128 = vector.shape_cast %127 : vector<1x1x32xf32> to vector<1x32xf32>
    %129 = vector.extract_strided_slice %82 {offsets = [3, 2, 0], sizes = [1, 1, 32], strides = [1, 1, 1]} : vector<6x6x32xf32> to vector<1x1x32xf32>
    %130 = vector.shape_cast %129 : vector<1x1x32xf32> to vector<1x32xf32>
    %131 = tpu.concatenate %124, %126, %128, %130 in 0 : vector<1x32xf32>, vector<1x32xf32>, vector<1x32xf32>, vector<1x32xf32> -> vector<4x32xf32>
    %c3_74 = arith.constant 3 : index
    %c0_75 = arith.constant 0 : index
    %c0_76 = arith.constant 0 : index
    %132 = vector.load %arg3[%c3_74, %c0_75, %c0_76] : memref<9x32x32xf32, #tpu.memory_space<vmem>>, vector<1x32x32xf32>
    %133 = vector.shape_cast %132 : vector<1x32x32xf32> to vector<32x32xf32>
    %cst_77 = arith.constant dense<0.000000e+00> : vector<4x32xf32>
    %134 = tpu.matmul %131, %133, %cst_77 {dimension_numbers = #tpu.dot_dimension_numbers<[1], [0], [0], [1], [0, 0, 1, 1], [], []>} : vector<4x32xf32>, vector<32x32xf32>, vector<4x32xf32> -> vector<4x32xf32>
    %135 = arith.addf %122, %134 : vector<4x32xf32>
    %136 = vector.extract_strided_slice %82 {offsets = [1, 1, 0], sizes = [1, 1, 32], strides = [1, 1, 1]} : vector<6x6x32xf32> to vector<1x1x32xf32>
    %137 = vector.shape_cast %136 : vector<1x1x32xf32> to vector<1x32xf32>
    %138 = vector.extract_strided_slice %82 {offsets = [1, 3, 0], sizes = [1, 1, 32], strides = [1, 1, 1]} : vector<6x6x32xf32> to vector<1x1x32xf32>
    %139 = vector.shape_cast %138 : vector<1x1x32xf32> to vector<1x32xf32>
    %140 = vector.extract_strided_slice %82 {offsets = [3, 1, 0], sizes = [1, 1, 32], strides = [1, 1, 1]} : vector<6x6x32xf32> to vector<1x1x32xf32>
    %141 = vector.shape_cast %140 : vector<1x1x32xf32> to vector<1x32xf32>
    %142 = vector.extract_strided_slice %82 {offsets = [3, 3, 0], sizes = [1, 1, 32], strides = [1, 1, 1]} : vector<6x6x32xf32> to vector<1x1x32xf32>
    %143 = vector.shape_cast %142 : vector<1x1x32xf32> to vector<1x32xf32>
    %144 = tpu.concatenate %137, %139, %141, %143 in 0 : vector<1x32xf32>, vector<1x32xf32>, vector<1x32xf32>, vector<1x32xf32> -> vector<4x32xf32>
    %c4_78 = arith.constant 4 : index
    %c0_79 = arith.constant 0 : index
    %c0_80 = arith.constant 0 : index
    %145 = vector.load %arg3[%c4_78, %c0_79, %c0_80] : memref<9x32x32xf32, #tpu.memory_space<vmem>>, vector<1x32x32xf32>
    %146 = vector.shape_cast %145 : vector<1x32x32xf32> to vector<32x32xf32>
    %cst_81 = arith.constant dense<0.000000e+00> : vector<4x32xf32>
    %147 = tpu.matmul %144, %146, %cst_81 {dimension_numbers = #tpu.dot_dimension_numbers<[1], [0], [0], [1], [0, 0, 1, 1], [], []>} : vector<4x32xf32>, vector<32x32xf32>, vector<4x32xf32> -> vector<4x32xf32>
    %148 = arith.addf %135, %147 : vector<4x32xf32>
    %149 = vector.extract_strided_slice %82 {offsets = [1, 2, 0], sizes = [1, 1, 32], strides = [1, 1, 1]} : vector<6x6x32xf32> to vector<1x1x32xf32>
    %150 = vector.shape_cast %149 : vector<1x1x32xf32> to vector<1x32xf32>
    %151 = vector.extract_strided_slice %82 {offsets = [1, 4, 0], sizes = [1, 1, 32], strides = [1, 1, 1]} : vector<6x6x32xf32> to vector<1x1x32xf32>
    %152 = vector.shape_cast %151 : vector<1x1x32xf32> to vector<1x32xf32>
    %153 = vector.extract_strided_slice %82 {offsets = [3, 2, 0], sizes = [1, 1, 32], strides = [1, 1, 1]} : vector<6x6x32xf32> to vector<1x1x32xf32>
    %154 = vector.shape_cast %153 : vector<1x1x32xf32> to vector<1x32xf32>
    %155 = vector.extract_strided_slice %82 {offsets = [3, 4, 0], sizes = [1, 1, 32], strides = [1, 1, 1]} : vector<6x6x32xf32> to vector<1x1x32xf32>
    %156 = vector.shape_cast %155 : vector<1x1x32xf32> to vector<1x32xf32>
    %157 = tpu.concatenate %150, %152, %154, %156 in 0 : vector<1x32xf32>, vector<1x32xf32>, vector<1x32xf32>, vector<1x32xf32> -> vector<4x32xf32>
    %c5_82 = arith.constant 5 : index
    %c0_83 = arith.constant 0 : index
    %c0_84 = arith.constant 0 : index
    %158 = vector.load %arg3[%c5_82, %c0_83, %c0_84] : memref<9x32x32xf32, #tpu.memory_space<vmem>>, vector<1x32x32xf32>
    %159 = vector.shape_cast %158 : vector<1x32x32xf32> to vector<32x32xf32>
    %cst_85 = arith.constant dense<0.000000e+00> : vector<4x32xf32>
    %160 = tpu.matmul %157, %159, %cst_85 {dimension_numbers = #tpu.dot_dimension_numbers<[1], [0], [0], [1], [0, 0, 1, 1], [], []>} : vector<4x32xf32>, vector<32x32xf32>, vector<4x32xf32> -> vector<4x32xf32>
    %161 = arith.addf %148, %160 : vector<4x32xf32>
    %162 = vector.extract_strided_slice %82 {offsets = [2, 0, 0], sizes = [1, 1, 32], strides = [1, 1, 1]} : vector<6x6x32xf32> to vector<1x1x32xf32>
    %163 = vector.shape_cast %162 : vector<1x1x32xf32> to vector<1x32xf32>
    %164 = vector.extract_strided_slice %82 {offsets = [2, 2, 0], sizes = [1, 1, 32], strides = [1, 1, 1]} : vector<6x6x32xf32> to vector<1x1x32xf32>
    %165 = vector.shape_cast %164 : vector<1x1x32xf32> to vector<1x32xf32>
    %166 = vector.extract_strided_slice %82 {offsets = [4, 0, 0], sizes = [1, 1, 32], strides = [1, 1, 1]} : vector<6x6x32xf32> to vector<1x1x32xf32>
    %167 = vector.shape_cast %166 : vector<1x1x32xf32> to vector<1x32xf32>
    %168 = vector.extract_strided_slice %82 {offsets = [4, 2, 0], sizes = [1, 1, 32], strides = [1, 1, 1]} : vector<6x6x32xf32> to vector<1x1x32xf32>
    %169 = vector.shape_cast %168 : vector<1x1x32xf32> to vector<1x32xf32>
    %170 = tpu.concatenate %163, %165, %167, %169 in 0 : vector<1x32xf32>, vector<1x32xf32>, vector<1x32xf32>, vector<1x32xf32> -> vector<4x32xf32>
    %c6_86 = arith.constant 6 : index
    %c0_87 = arith.constant 0 : index
    %c0_88 = arith.constant 0 : index
    %171 = vector.load %arg3[%c6_86, %c0_87, %c0_88] : memref<9x32x32xf32, #tpu.memory_space<vmem>>, vector<1x32x32xf32>
    %172 = vector.shape_cast %171 : vector<1x32x32xf32> to vector<32x32xf32>
    %cst_89 = arith.constant dense<0.000000e+00> : vector<4x32xf32>
    %173 = tpu.matmul %170, %172, %cst_89 {dimension_numbers = #tpu.dot_dimension_numbers<[1], [0], [0], [1], [0, 0, 1, 1], [], []>} : vector<4x32xf32>, vector<32x32xf32>, vector<4x32xf32> -> vector<4x32xf32>
    %174 = arith.addf %161, %173 : vector<4x32xf32>
    %175 = vector.extract_strided_slice %82 {offsets = [2, 1, 0], sizes = [1, 1, 32], strides = [1, 1, 1]} : vector<6x6x32xf32> to vector<1x1x32xf32>
    %176 = vector.shape_cast %175 : vector<1x1x32xf32> to vector<1x32xf32>
    %177 = vector.extract_strided_slice %82 {offsets = [2, 3, 0], sizes = [1, 1, 32], strides = [1, 1, 1]} : vector<6x6x32xf32> to vector<1x1x32xf32>
    %178 = vector.shape_cast %177 : vector<1x1x32xf32> to vector<1x32xf32>
    %179 = vector.extract_strided_slice %82 {offsets = [4, 1, 0], sizes = [1, 1, 32], strides = [1, 1, 1]} : vector<6x6x32xf32> to vector<1x1x32xf32>
    %180 = vector.shape_cast %179 : vector<1x1x32xf32> to vector<1x32xf32>
    %181 = vector.extract_strided_slice %82 {offsets = [4, 3, 0], sizes = [1, 1, 32], strides = [1, 1, 1]} : vector<6x6x32xf32> to vector<1x1x32xf32>
    %182 = vector.shape_cast %181 : vector<1x1x32xf32> to vector<1x32xf32>
    %183 = tpu.concatenate %176, %178, %180, %182 in 0 : vector<1x32xf32>, vector<1x32xf32>, vector<1x32xf32>, vector<1x32xf32> -> vector<4x32xf32>
    %c7_90 = arith.constant 7 : index
    %c0_91 = arith.constant 0 : index
    %c0_92 = arith.constant 0 : index
    %184 = vector.load %arg3[%c7_90, %c0_91, %c0_92] : memref<9x32x32xf32, #tpu.memory_space<vmem>>, vector<1x32x32xf32>
    %185 = vector.shape_cast %184 : vector<1x32x32xf32> to vector<32x32xf32>
    %cst_93 = arith.constant dense<0.000000e+00> : vector<4x32xf32>
    %186 = tpu.matmul %183, %185, %cst_93 {dimension_numbers = #tpu.dot_dimension_numbers<[1], [0], [0], [1], [0, 0, 1, 1], [], []>} : vector<4x32xf32>, vector<32x32xf32>, vector<4x32xf32> -> vector<4x32xf32>
    %187 = arith.addf %174, %186 : vector<4x32xf32>
    %188 = vector.extract_strided_slice %82 {offsets = [2, 2, 0], sizes = [1, 1, 32], strides = [1, 1, 1]} : vector<6x6x32xf32> to vector<1x1x32xf32>
    %189 = vector.shape_cast %188 : vector<1x1x32xf32> to vector<1x32xf32>
    %190 = vector.extract_strided_slice %82 {offsets = [2, 4, 0], sizes = [1, 1, 32], strides = [1, 1, 1]} : vector<6x6x32xf32> to vector<1x1x32xf32>
    %191 = vector.shape_cast %190 : vector<1x1x32xf32> to vector<1x32xf32>
    %192 = vector.extract_strided_slice %82 {offsets = [4, 2, 0], sizes = [1, 1, 32], strides = [1, 1, 1]} : vector<6x6x32xf32> to vector<1x1x32xf32>
    %193 = vector.shape_cast %192 : vector<1x1x32xf32> to vector<1x32xf32>
    %194 = vector.extract_strided_slice %82 {offsets = [4, 4, 0], sizes = [1, 1, 32], strides = [1, 1, 1]} : vector<6x6x32xf32> to vector<1x1x32xf32>
    %195 = vector.shape_cast %194 : vector<1x1x32xf32> to vector<1x32xf32>
    %196 = tpu.concatenate %189, %191, %193, %195 in 0 : vector<1x32xf32>, vector<1x32xf32>, vector<1x32xf32>, vector<1x32xf32> -> vector<4x32xf32>
    %c8_94 = arith.constant 8 : index
    %c0_95 = arith.constant 0 : index
    %c0_96 = arith.constant 0 : index
    %197 = vector.load %arg3[%c8_94, %c0_95, %c0_96] : memref<9x32x32xf32, #tpu.memory_space<vmem>>, vector<1x32x32xf32>
    %198 = vector.shape_cast %197 : vector<1x32x32xf32> to vector<32x32xf32>
    %cst_97 = arith.constant dense<0.000000e+00> : vector<4x32xf32>
    %199 = tpu.matmul %196, %198, %cst_97 {dimension_numbers = #tpu.dot_dimension_numbers<[1], [0], [0], [1], [0, 0, 1, 1], [], []>} : vector<4x32xf32>, vector<32x32xf32>, vector<4x32xf32> -> vector<4x32xf32>
    %200 = arith.addf %187, %199 : vector<4x32xf32>
    %201 = vector.broadcast %77 : vector<1x32xf32> to vector<4x32xf32>
    %202 = arith.mulf %200, %201 : vector<4x32xf32>
    %203 = vector.broadcast %78 : vector<1x32xf32> to vector<4x32xf32>
    %204 = arith.addf %202, %203 : vector<4x32xf32>
    %cst_98 = arith.constant 2.000000e+01 : f32
    %205 = vector.broadcast %cst_98 : f32 to vector<4x32xf32>
    %206 = arith.cmpf ogt, %204, %205 : vector<4x32xf32>
    %cst_99 = arith.constant 2.000000e+01 : f32
    %207 = vector.broadcast %cst_99 : f32 to vector<4x32xf32>
    %208 = arith.minimumf %204, %207 : vector<4x32xf32>
    %209 = math.exp %208 : vector<4x32xf32>
    %210 = math.log1p %209 : vector<4x32xf32>
    %211 = arith.select %206, %204, %210 : vector<4x32xi1>, vector<4x32xf32>
    %212 = math.tanh %211 : vector<4x32xf32>
    %213 = arith.mulf %204, %212 : vector<4x32xf32>
    %214 = vector.shape_cast %213 : vector<4x32xf32> to vector<2x2x32xf32>
    %c2_100 = arith.constant 2 : index
    %c0_101 = arith.constant 0 : index
    %215 = vector.load %arg5[%c2_100, %c0_101] : memref<3x32xf32, #tpu.memory_space<vmem>>, vector<1x32xf32>
    %c2_102 = arith.constant 2 : index
    %c0_103 = arith.constant 0 : index
    %216 = vector.load %arg6[%c2_102, %c0_103] : memref<3x32xf32, #tpu.memory_space<vmem>>, vector<1x32xf32>
    %cst_104 = arith.constant 0.000000e+00 : f32
    %217 = vector.broadcast %cst_104 : f32 to vector<6x6x32xf32>
    %c0_105 = arith.constant 0 : index
    %c0_106 = arith.constant 0 : index
    %c0_107 = arith.constant 0 : index
    %218 = vector.load %arg10[%c0_105, %c0_106, %c0_107] : memref<6x6x32xf32, #tpu.memory_space<vmem>>, vector<6x6x32xf32>
    tpu.vector_store %arg10[%c0_105, %c0_106, %c0_107], %217 {strides = array<i32>} : memref<6x6x32xf32, #tpu.memory_space<vmem>>, vector<6x6x32xf32>,
    %c1_108 = arith.constant 1 : index
    %c1_109 = arith.constant 1 : index
    %c0_110 = arith.constant 0 : index
    %219 = vector.load %arg10[%c1_108, %c1_109, %c0_110] : memref<6x6x32xf32, #tpu.memory_space<vmem>>, vector<2x2x32xf32>
    tpu.vector_store %arg10[%c1_108, %c1_109, %c0_110], %214 {strides = array<i32>} : memref<6x6x32xf32, #tpu.memory_space<vmem>>, vector<2x2x32xf32>,
    %c0_111 = arith.constant 0 : index
    %c0_112 = arith.constant 0 : index
    %c0_113 = arith.constant 0 : index
    %220 = vector.load %arg10[%c0_111, %c0_112, %c0_113] : memref<6x6x32xf32, #tpu.memory_space<vmem>>, vector<4x4x32xf32>
    %cst_114 = arith.constant 0.000000e+00 : f32
    %221 = vector.broadcast %cst_114 : f32 to vector<1x32xf32>
    %222 = vector.extract_strided_slice %220 {offsets = [0, 0, 0], sizes = [1, 1, 32], strides = [1, 1, 1]} : vector<4x4x32xf32> to vector<1x1x32xf32>
    %223 = vector.shape_cast %222 : vector<1x1x32xf32> to vector<1x32xf32>
    %c0_115 = arith.constant 0 : index
    %c0_116 = arith.constant 0 : index
    %c0_117 = arith.constant 0 : index
    %224 = vector.load %arg4[%c0_115, %c0_116, %c0_117] : memref<9x32x32xf32, #tpu.memory_space<vmem>>, vector<1x32x32xf32>
    %225 = vector.shape_cast %224 : vector<1x32x32xf32> to vector<32x32xf32>
    %cst_118 = arith.constant dense<0.000000e+00> : vector<1x32xf32>
    %226 = tpu.matmul %223, %225, %cst_118 {dimension_numbers = #tpu.dot_dimension_numbers<[1], [0], [0], [1], [0, 0, 1, 1], [], []>} : vector<1x32xf32>, vector<32x32xf32>, vector<1x32xf32> -> vector<1x32xf32>
    %227 = arith.addf %221, %226 : vector<1x32xf32>
    %228 = vector.extract_strided_slice %220 {offsets = [0, 1, 0], sizes = [1, 1, 32], strides = [1, 1, 1]} : vector<4x4x32xf32> to vector<1x1x32xf32>
    %229 = vector.shape_cast %228 : vector<1x1x32xf32> to vector<1x32xf32>
    %c1_119 = arith.constant 1 : index
    %c0_120 = arith.constant 0 : index
    %c0_121 = arith.constant 0 : index
    %230 = vector.load %arg4[%c1_119, %c0_120, %c0_121] : memref<9x32x32xf32, #tpu.memory_space<vmem>>, vector<1x32x32xf32>
    %231 = vector.shape_cast %230 : vector<1x32x32xf32> to vector<32x32xf32>
    %cst_122 = arith.constant dense<0.000000e+00> : vector<1x32xf32>
    %232 = tpu.matmul %229, %231, %cst_122 {dimension_numbers = #tpu.dot_dimension_numbers<[1], [0], [0], [1], [0, 0, 1, 1], [], []>} : vector<1x32xf32>, vector<32x32xf32>, vector<1x32xf32> -> vector<1x32xf32>
    %233 = arith.addf %227, %232 : vector<1x32xf32>
    %234 = vector.extract_strided_slice %220 {offsets = [0, 2, 0], sizes = [1, 1, 32], strides = [1, 1, 1]} : vector<4x4x32xf32> to vector<1x1x32xf32>
    %235 = vector.shape_cast %234 : vector<1x1x32xf32> to vector<1x32xf32>
    %c2_123 = arith.constant 2 : index
    %c0_124 = arith.constant 0 : index
    %c0_125 = arith.constant 0 : index
    %236 = vector.load %arg4[%c2_123, %c0_124, %c0_125] : memref<9x32x32xf32, #tpu.memory_space<vmem>>, vector<1x32x32xf32>
    %237 = vector.shape_cast %236 : vector<1x32x32xf32> to vector<32x32xf32>
    %cst_126 = arith.constant dense<0.000000e+00> : vector<1x32xf32>
    %238 = tpu.matmul %235, %237, %cst_126 {dimension_numbers = #tpu.dot_dimension_numbers<[1], [0], [0], [1], [0, 0, 1, 1], [], []>} : vector<1x32xf32>, vector<32x32xf32>, vector<1x32xf32> -> vector<1x32xf32>
    %239 = arith.addf %233, %238 : vector<1x32xf32>
    %240 = vector.extract_strided_slice %220 {offsets = [1, 0, 0], sizes = [1, 1, 32], strides = [1, 1, 1]} : vector<4x4x32xf32> to vector<1x1x32xf32>
    %241 = vector.shape_cast %240 : vector<1x1x32xf32> to vector<1x32xf32>
    %c3_127 = arith.constant 3 : index
    %c0_128 = arith.constant 0 : index
    %c0_129 = arith.constant 0 : index
    %242 = vector.load %arg4[%c3_127, %c0_128, %c0_129] : memref<9x32x32xf32, #tpu.memory_space<vmem>>, vector<1x32x32xf32>
    %243 = vector.shape_cast %242 : vector<1x32x32xf32> to vector<32x32xf32>
    %cst_130 = arith.constant dense<0.000000e+00> : vector<1x32xf32>
    %244 = tpu.matmul %241, %243, %cst_130 {dimension_numbers = #tpu.dot_dimension_numbers<[1], [0], [0], [1], [0, 0, 1, 1], [], []>} : vector<1x32xf32>, vector<32x32xf32>, vector<1x32xf32> -> vector<1x32xf32>
    %245 = arith.addf %239, %244 : vector<1x32xf32>
    %246 = vector.extract_strided_slice %220 {offsets = [1, 1, 0], sizes = [1, 1, 32], strides = [1, 1, 1]} : vector<4x4x32xf32> to vector<1x1x32xf32>
    %247 = vector.shape_cast %246 : vector<1x1x32xf32> to vector<1x32xf32>
    %c4_131 = arith.constant 4 : index
    %c0_132 = arith.constant 0 : index
    %c0_133 = arith.constant 0 : index
    %248 = vector.load %arg4[%c4_131, %c0_132, %c0_133] : memref<9x32x32xf32, #tpu.memory_space<vmem>>, vector<1x32x32xf32>
    %249 = vector.shape_cast %248 : vector<1x32x32xf32> to vector<32x32xf32>
    %cst_134 = arith.constant dense<0.000000e+00> : vector<1x32xf32>
    %250 = tpu.matmul %247, %249, %cst_134 {dimension_numbers = #tpu.dot_dimension_numbers<[1], [0], [0], [1], [0, 0, 1, 1], [], []>} : vector<1x32xf32>, vector<32x32xf32>, vector<1x32xf32> -> vector<1x32xf32>
    %251 = arith.addf %245, %250 : vector<1x32xf32>
    %252 = vector.extract_strided_slice %220 {offsets = [1, 2, 0], sizes = [1, 1, 32], strides = [1, 1, 1]} : vector<4x4x32xf32> to vector<1x1x32xf32>
    %253 = vector.shape_cast %252 : vector<1x1x32xf32> to vector<1x32xf32>
    %c5_135 = arith.constant 5 : index
    %c0_136 = arith.constant 0 : index
    %c0_137 = arith.constant 0 : index
    %254 = vector.load %arg4[%c5_135, %c0_136, %c0_137] : memref<9x32x32xf32, #tpu.memory_space<vmem>>, vector<1x32x32xf32>
    %255 = vector.shape_cast %254 : vector<1x32x32xf32> to vector<32x32xf32>
    %cst_138 = arith.constant dense<0.000000e+00> : vector<1x32xf32>
    %256 = tpu.matmul %253, %255, %cst_138 {dimension_numbers = #tpu.dot_dimension_numbers<[1], [0], [0], [1], [0, 0, 1, 1], [], []>} : vector<1x32xf32>, vector<32x32xf32>, vector<1x32xf32> -> vector<1x32xf32>
    %257 = arith.addf %251, %256 : vector<1x32xf32>
    %258 = vector.extract_strided_slice %220 {offsets = [2, 0, 0], sizes = [1, 1, 32], strides = [1, 1, 1]} : vector<4x4x32xf32> to vector<1x1x32xf32>
    %259 = vector.shape_cast %258 : vector<1x1x32xf32> to vector<1x32xf32>
    %c6_139 = arith.constant 6 : index
    %c0_140 = arith.constant 0 : index
    %c0_141 = arith.constant 0 : index
    %260 = vector.load %arg4[%c6_139, %c0_140, %c0_141] : memref<9x32x32xf32, #tpu.memory_space<vmem>>, vector<1x32x32xf32>
    %261 = vector.shape_cast %260 : vector<1x32x32xf32> to vector<32x32xf32>
    %cst_142 = arith.constant dense<0.000000e+00> : vector<1x32xf32>
    %262 = tpu.matmul %259, %261, %cst_142 {dimension_numbers = #tpu.dot_dimension_numbers<[1], [0], [0], [1], [0, 0, 1, 1], [], []>} : vector<1x32xf32>, vector<32x32xf32>, vector<1x32xf32> -> vector<1x32xf32>
    %263 = arith.addf %257, %262 : vector<1x32xf32>
    %264 = vector.extract_strided_slice %220 {offsets = [2, 1, 0], sizes = [1, 1, 32], strides = [1, 1, 1]} : vector<4x4x32xf32> to vector<1x1x32xf32>
    %265 = vector.shape_cast %264 : vector<1x1x32xf32> to vector<1x32xf32>
    %c7_143 = arith.constant 7 : index
    %c0_144 = arith.constant 0 : index
    %c0_145 = arith.constant 0 : index
    %266 = vector.load %arg4[%c7_143, %c0_144, %c0_145] : memref<9x32x32xf32, #tpu.memory_space<vmem>>, vector<1x32x32xf32>
    %267 = vector.shape_cast %266 : vector<1x32x32xf32> to vector<32x32xf32>
    %cst_146 = arith.constant dense<0.000000e+00> : vector<1x32xf32>
    %268 = tpu.matmul %265, %267, %cst_146 {dimension_numbers = #tpu.dot_dimension_numbers<[1], [0], [0], [1], [0, 0, 1, 1], [], []>} : vector<1x32xf32>, vector<32x32xf32>, vector<1x32xf32> -> vector<1x32xf32>
    %269 = arith.addf %263, %268 : vector<1x32xf32>
    %270 = vector.extract_strided_slice %220 {offsets = [2, 2, 0], sizes = [1, 1, 32], strides = [1, 1, 1]} : vector<4x4x32xf32> to vector<1x1x32xf32>
    %271 = vector.shape_cast %270 : vector<1x1x32xf32> to vector<1x32xf32>
    %c8_147 = arith.constant 8 : index
    %c0_148 = arith.constant 0 : index
    %c0_149 = arith.constant 0 : index
    %272 = vector.load %arg4[%c8_147, %c0_148, %c0_149] : memref<9x32x32xf32, #tpu.memory_space<vmem>>, vector<1x32x32xf32>
    %273 = vector.shape_cast %272 : vector<1x32x32xf32> to vector<32x32xf32>
    %cst_150 = arith.constant dense<0.000000e+00> : vector<1x32xf32>
    %274 = tpu.matmul %271, %273, %cst_150 {dimension_numbers = #tpu.dot_dimension_numbers<[1], [0], [0], [1], [0, 0, 1, 1], [], []>} : vector<1x32xf32>, vector<32x32xf32>, vector<1x32xf32> -> vector<1x32xf32>
    %275 = arith.addf %269, %274 : vector<1x32xf32>
    %276 = arith.mulf %275, %215 : vector<1x32xf32>
    %277 = arith.addf %276, %216 : vector<1x32xf32>
    %cst_151 = arith.constant 2.000000e+01 : f32
    %278 = vector.broadcast %cst_151 : f32 to vector<1x32xf32>
    %279 = arith.cmpf ogt, %277, %278 : vector<1x32xf32>
    %cst_152 = arith.constant 2.000000e+01 : f32
    %280 = vector.broadcast %cst_152 : f32 to vector<1x32xf32>
    %281 = arith.minimumf %277, %280 : vector<1x32xf32>
    %282 = math.exp %281 : vector<1x32xf32>
    %283 = math.log1p %282 : vector<1x32xf32>
    %284 = arith.select %279, %277, %283 : vector<1x32xi1>, vector<1x32xf32>
    %285 = math.tanh %284 : vector<1x32xf32>
    %286 = arith.mulf %277, %285 : vector<1x32xf32>
    %287 = vector.shape_cast %286 : vector<1x32xf32> to vector<1x1x32xf32>
    %288 = vector.shape_cast %287 : vector<1x1x32xf32> to vector<1x32xf32>
    %c0_153 = arith.constant 0 : index
    %c0_154 = arith.constant 0 : index
    %289 = vector.load %arg7[%c0_153, %c0_154] : memref<32x32xf32, #tpu.memory_space<vmem>>, vector<32x32xf32>
    %cst_155 = arith.constant dense<0.000000e+00> : vector<1x32xf32>
    %290 = tpu.matmul %288, %289, %cst_155 {dimension_numbers = #tpu.dot_dimension_numbers<[1], [0], [0], [1], [0, 0, 1, 1], [], []>} : vector<1x32xf32>, vector<32x32xf32>, vector<1x32xf32> -> vector<1x32xf32>
    %c0_156 = arith.constant 0 : index
    %c0_157 = arith.constant 0 : index
    %291 = vector.load %arg8[%c0_156, %c0_157] : memref<1x32xf32, #tpu.memory_space<vmem>>, vector<1x32xf32>
    %292 = arith.addf %290, %291 : vector<1x32xf32>
    %293 = vector.shape_cast %292 : vector<1x32xf32> to vector<1x1x32xf32>
    %c0_158 = arith.constant 0 : index
    %c0_159 = arith.constant 0 : index
    %c0_160 = arith.constant 0 : index
    %294 = vector.load %arg9[%c0_158, %c0_159, %c0_160] : memref<1x1x32xf32, #tpu.memory_space<vmem>>, vector<1x1x32xf32>
    tpu.vector_store %arg9[%c0_158, %c0_159, %c0_160], %293 {strides = array<i32>} : memref<1x1x32xf32, #tpu.memory_space<vmem>>, vector<1x1x32xf32>,
    return
  }
  func.func @transform_0(%arg0: i32) -> (i32, i32, i32, i32) {
    %c0_i32 = arith.constant 0 : i32
    %c0_i32_0 = arith.constant 0 : i32
    %c0_i32_1 = arith.constant 0 : i32
    %c0_i32_2 = arith.constant 0 : i32
    return %arg0, %c0_i32, %c0_i32_0, %c0_i32_1 : i32, i32, i32, i32
  }
  func.func @transform_1(%arg0: i32) -> (i32, i32, i32) {
    %c0_i32 = arith.constant 0 : i32
    %c0_i32_0 = arith.constant 0 : i32
    %c0_i32_1 = arith.constant 0 : i32
    %c0_i32_2 = arith.constant 0 : i32
    return %c0_i32, %c0_i32_0, %c0_i32_1 : i32, i32, i32
  }
  func.func @transform_2(%arg0: i32) -> (i32, i32, i32) {
    %c0_i32 = arith.constant 0 : i32
    %c0_i32_0 = arith.constant 0 : i32
    %c0_i32_1 = arith.constant 0 : i32
    %c0_i32_2 = arith.constant 0 : i32
    return %c0_i32, %c0_i32_0, %c0_i32_1 : i32, i32, i32
  }
  func.func @transform_3(%arg0: i32) -> (i32, i32, i32) {
    %c0_i32 = arith.constant 0 : i32
    %c0_i32_0 = arith.constant 0 : i32
    %c0_i32_1 = arith.constant 0 : i32
    %c0_i32_2 = arith.constant 0 : i32
    return %c0_i32, %c0_i32_0, %c0_i32_1 : i32, i32, i32
  }
  func.func @transform_4(%arg0: i32) -> (i32, i32) {
    %c0_i32 = arith.constant 0 : i32
    %c0_i32_0 = arith.constant 0 : i32
    %c0_i32_1 = arith.constant 0 : i32
    return %c0_i32, %c0_i32_0 : i32, i32
  }
  func.func @transform_5(%arg0: i32) -> (i32, i32) {
    %c0_i32 = arith.constant 0 : i32
    %c0_i32_0 = arith.constant 0 : i32
    %c0_i32_1 = arith.constant 0 : i32
    return %c0_i32, %c0_i32_0 : i32, i32
  }
  func.func @transform_6(%arg0: i32) -> (i32, i32) {
    %c0_i32 = arith.constant 0 : i32
    %c0_i32_0 = arith.constant 0 : i32
    %c0_i32_1 = arith.constant 0 : i32
    return %c0_i32, %c0_i32_0 : i32, i32
  }
  func.func @transform_7(%arg0: i32) -> (i32, i32) {
    %c0_i32 = arith.constant 0 : i32
    %c0_i32_0 = arith.constant 0 : i32
    %c0_i32_1 = arith.constant 0 : i32
    return %c0_i32, %c0_i32_0 : i32, i32
  }
  func.func @transform_8(%arg0: i32) -> (i32, i32, i32) {
    %c0_i32 = arith.constant 0 : i32
    %c0_i32_0 = arith.constant 0 : i32
    %c0_i32_1 = arith.constant 0 : i32
    return %arg0, %c0_i32, %c0_i32_0 : i32, i32, i32
  }
}

</mosaic_0001>

<llo_original>
// kernel: tpu_custom_call.1
$region0: #{tpu_custom_call.1}
  #allocation0 [shape = 'u32[]', space=smem, size = 0x4, offset = 0x4, fixed_abs, tag = 'smem constant byte address 0x4 - core index']
  #allocation1 [shape = 'u32[72,128]{1,0:T(1,128)}', space=vmem, size = 0x9000, scoped, tag = 'internal scratch']
  #allocation2 [shape = 'f32[6,6,32]{2,1,0:T(8,128)}', space=vmem, size = 0x6000, scoped, tag = 'scratch operand']
  %s0 = inlined_call_operand.hbm [shape: f32[2,4,4,32], index: 0, kind: input, shape index: {}]
  %s1 = inlined_call_operand.hbm [shape: f32[9,32,32], index: 1, kind: input, shape index: {}]
  %s2 = inlined_call_operand.hbm [shape: f32[9,32,32], index: 2, kind: input, shape index: {}]
  %s3 = inlined_call_operand.hbm [shape: f32[9,32,32], index: 3, kind: input, shape index: {}]
  %s4 = inlined_call_operand.hbm [shape: f32[3,32], index: 4, kind: input, shape index: {}]
  %s5 = inlined_call_operand.vmem [shape: f32[3,32], index: 5, kind: input, shape index: {}]
  %s6 = inlined_call_operand.hbm [shape: f32[32,32], index: 6, kind: input, shape index: {}]
  %s7 = inlined_call_operand.vmem [shape: f32[1,32], index: 7, kind: input, shape index: {}]
  %s8 = inlined_call_operand.hbm [shape: f32[2,1,32], index: 8, kind: output, shape index: {}]
  %s9 = sld [smem:[#allocation0]]
  $region89: #{tpu_custom_call.1} parent=0
    _
  %s11 = ssub.s32 1, %s9
  %s12 = scalar_select 0, %s11, %s9
  $region1: #{tpu_custom_call.1} parent=0
    #allocation3 [shape = 'u8[16384]{0}', space=vmem, size = 0x4000, scoped, tag = 'input window, operand 0']
    #allocation4 [shape = 's32[2]{0}', space=sflag, size = 0x8, scoped, tag = 'scoped memory for tpu_custom_call.1']
    #allocation5 [shape = 's32[2]{0}', space=sflag, size = 0x8, scoped, tag = 'scoped memory for tpu_custom_call.1']
    #allocation6 [shape = 'u8[147456]{0}', space=vmem, size = 0x24000, scoped, tag = 'input window, operand 1, single buffered']
    #allocation7 [shape = 's32[1]{0}', space=sflag, size = 0x4, scoped, tag = 'scoped memory for tpu_custom_call.1']
    #allocation8 [shape = 'u8[147456]{0}', space=vmem, size = 0x24000, scoped, tag = 'input window, operand 2, single buffered']
    #allocation9 [shape = 'u8[147456]{0}', space=vmem, size = 0x24000, scoped, tag = 'input window, operand 3, single buffered']
    #allocation10 [shape = 's32[1]{0}', space=sflag, size = 0x4, scoped, tag = 'scoped memory for tpu_custom_call.1']
    #allocation11 [shape = 'u8[2048]{0}', space=vmem, size = 0x800, scoped, tag = 'input window, operand 4, single buffered']
    #allocation12 [shape = 'u8[16384]{0}', space=vmem, size = 0x4000, scoped, tag = 'input window, operand 6, single buffered']
    #allocation13 [shape = 's32[1]{0}', space=sflag, size = 0x4, scoped, tag = 'scoped memory for tpu_custom_call.1']
    #allocation14 [shape = 'u8[1024]{0}', space=vmem, size = 0x400, scoped, tag = 'output window, operand 0']
    %13 = vsyncpa [#allocation4], 0
    %s14 = scalar_lea.sflag [#allocation4], 1
    %15 = vsyncpa %s14, 0
    %16 = vsyncpa [#allocation7], 0
    %17 = vsyncpa [#allocation10], 0
    %18 = vsyncpa [#allocation13], 0
    %19 = vsyncpa [#allocation5], 0
    %s20 = scalar_lea.sflag [#allocation5], 1
    %21 = vsyncpa %s20, 0
    loop: start=0, step=1, limit=4
    $region2: #{tpu_custom_call.1} parent=1 // loop_pre_header
      _
    $region3: #{tpu_custom_call.1} parent=1 // loop_header
      %s23 = sphi 0, %s27
      %p24 = scmp.ge.s32.totalorder %s23, 4
      %s33 = sphi 0, %s35
      %s36 = sphi 0, %s33
      %s37 = sphi 0, %s36
      %s53 = sphi 0, %s37
      %s57 = sphi 0, %s57
      %s59 = sphi 0, %s57
      %s60 = sphi 0, %s59
      %s74 = sphi 0, %s60
      %s78 = sphi 0, %s78
      %s80 = sphi 0, %s78
      %s81 = sphi 0, %s80
      %s95 = sphi 0, %s81
      %s99 = sphi 0, %s99
      %s101 = sphi 0, %s99
      %s102 = sphi 0, %s101
      %s116 = sphi 0, %s102
      %s120 = sphi 0, %s120
      %s122 = sphi 0, %s120
      %s123 = sphi 0, %s122
      %s137 = sphi 0, %s123
      %s141 = sphi 0, %s141
      %s143 = sphi 0, %s141
      %s144 = sphi 0, %s143
      %s158 = sphi 0, %s144
      %s162 = sphi 0, %s162
      %s164 = sphi 0, %s162
      %s165 = sphi 0, %s164
      %s179 = sphi 0, %s165
      %s183 = sphi 0, %s183
      %s185 = sphi 0, %s183
      %s186 = sphi 0, %s185
      %s200 = sphi 0, %s186
      %s206 = sphi 0, %s208
      %s209 = sphi 0, %s206
      %s210 = sphi 0, %s209
      %s226 = sphi 0, %s210
    $region4: #{tpu_custom_call.1} parent=1 // loop_header_branch
      %26 = sbr.rel (%p24) target = $region8
    $region5: #{tpu_custom_call.1} parent=1 // loop_body
      %s28 = ssub.s32 %s23, 1
      %s29 = ssub.s32 %s23, 2
      %s30 = sadd.s32 %s23, 1
      %s31 = ssub.s32 %s23, %s30
      %p32 = scmp.eq.s32.totalorder %s31, 0
      %s34 = sadd.s32 %s33, 1
      %s35 = scalar_select %p32, %s33, %s34
      %p38 = pneg %p32
      %p39 = scmp.eq.s32.totalorder %s23, 1
      %p40 = por %p38, %p39
      %p41 = scmp.ne.s32.totalorder %s33, %s36
      %p42 = scmp.eq.s32.totalorder %s23, 0
      %p43 = por %p41, %p42
      %p44 = scmp.ne.s32.totalorder %s33, %s36
      %p45 = scmp.eq.s32.totalorder %s28, 1
      %p46 = por %p44, %p45
      %p47 = scmp.ne.s32.totalorder %s36, %s37
      %p48 = scmp.eq.s32.totalorder %s28, 0
      %p49 = por %p47, %p48
      %p50 = scmp.ne.s32.totalorder %s36, %s37
      %p51 = scmp.eq.s32.totalorder %s29, 1
      %p52 = por %p50, %p51
      %p54 = scmp.ne.s32.totalorder %s37, %s53
      %p55 = scmp.eq.s32.totalorder %s29, 0
      %p56 = por %p54, %p55
      %s58 = sadd.s32 %s57, 1
      %p61 = scmp.eq.s32.totalorder %s23, 1
      %p62 = scmp.ne.s32.totalorder %s57, %s59
      %p63 = scmp.eq.s32.totalorder %s23, 0
      %p64 = por %p62, %p63
      %p65 = scmp.ne.s32.totalorder %s57, %s59
      %p66 = scmp.eq.s32.totalorder %s28, 1
      %p67 = por %p65, %p66
      %p68 = scmp.ne.s32.totalorder %s59, %s60
      %p69 = scmp.eq.s32.totalorder %s28, 0
      %p70 = por %p68, %p69
      %p71 = scmp.ne.s32.totalorder %s59, %s60
      %p72 = scmp.eq.s32.totalorder %s29, 1
      %p73 = por %p71, %p72
      %p75 = scmp.ne.s32.totalorder %s60, %s74
      %p76 = scmp.eq.s32.totalorder %s29, 0
      %p77 = por %p75, %p76
      %s79 = sadd.s32 %s78, 1
      %p82 = scmp.eq.s32.totalorder %s23, 1
      %p83 = scmp.ne.s32.totalorder %s78, %s80
      %p84 = scmp.eq.s32.totalorder %s23, 0
      %p85 = por %p83, %p84
      %p86 = scmp.ne.s32.totalorder %s78, %s80
      %p87 = scmp.eq.s32.totalorder %s28, 1
      %p88 = por %p86, %p87
      %p89 = scmp.ne.s32.totalorder %s80, %s81
      %p90 = scmp.eq.s32.totalorder %s28, 0
      %p91 = por %p89, %p90
      %p92 = scmp.ne.s32.totalorder %s80, %s81
      %p93 = scmp.eq.s32.totalorder %s29, 1
      %p94 = por %p92, %p93
      %p96 = scmp.ne.s32.totalorder %s81, %s95
      %p97 = scmp.eq.s32.totalorder %s29, 0
      %p98 = por %p96, %p97
      %s100 = sadd.s32 %s99, 1
      %p103 = scmp.eq.s32.totalorder %s23, 1
      %p104 = scmp.ne.s32.totalorder %s99, %s101
      %p105 = scmp.eq.s32.totalorder %s23, 0
      %p106 = por %p104, %p105
      %p107 = scmp.ne.s32.totalorder %s99, %s101
      %p108 = scmp.eq.s32.totalorder %s28, 1
      %p109 = por %p107, %p108
      %p110 = scmp.ne.s32.totalorder %s101, %s102
      %p111 = scmp.eq.s32.totalorder %s28, 0
      %p112 = por %p110, %p111
      %p113 = scmp.ne.s32.totalorder %s101, %s102
      %p114 = scmp.eq.s32.totalorder %s29, 1
      %p115 = por %p113, %p114
      %p117 = scmp.ne.s32.totalorder %s102, %s116
      %p118 = scmp.eq.s32.totalorder %s29, 0
      %p119 = por %p117, %p118
      %s121 = sadd.s32 %s120, 1
      %p124 = scmp.eq.s32.totalorder %s23, 1
      %p125 = scmp.ne.s32.totalorder %s120, %s122
      %p126 = scmp.eq.s32.totalorder %s23, 0
      %p127 = por %p125, %p126
      %p128 = scmp.ne.s32.totalorder %s120, %s122
      %p129 = scmp.eq.s32.totalorder %s28, 1
      %p130 = por %p128, %p129
      %p131 = scmp.ne.s32.totalorder %s122, %s123
      %p132 = scmp.eq.s32.totalorder %s28, 0
      %p133 = por %p131, %p132
      %p134 = scmp.ne.s32.totalorder %s122, %s123
      %p135 = scmp.eq.s32.totalorder %s29, 1
      %p136 = por %p134, %p135
      %p138 = scmp.ne.s32.totalorder %s123, %s137
      %p139 = scmp.eq.s32.totalorder %s29, 0
      %p140 = por %p138, %p139
      %s142 = sadd.s32 %s141, 1
      %p145 = scmp.eq.s32.totalorder %s23, 1
      %p146 = scmp.ne.s32.totalorder %s141, %s143
      %p147 = scmp.eq.s32.totalorder %s23, 0
      %p148 = por %p146, %p147
      %p149 = scmp.ne.s32.totalorder %s141, %s143
      %p150 = scmp.eq.s32.totalorder %s28, 1
      %p151 = por %p149, %p150
      %p152 = scmp.ne.s32.totalorder %s143, %s144
      %p153 = scmp.eq.s32.totalorder %s28, 0
      %p154 = por %p152, %p153
      %p155 = scmp.ne.s32.totalorder %s143, %s144
      %p156 = scmp.eq.s32.totalorder %s29, 1
      %p157 = por %p155, %p156
      %p159 = scmp.ne.s32.totalorder %s144, %s158
      %p160 = scmp.eq.s32.totalorder %s29, 0
      %p161 = por %p159, %p160
      %s163 = sadd.s32 %s162, 1
      %p166 = scmp.eq.s32.totalorder %s23, 1
      %p167 = scmp.ne.s32.totalorder %s162, %s164
      %p168 = scmp.eq.s32.totalorder %s23, 0
      %p169 = por %p167, %p168
      %p170 = scmp.ne.s32.totalorder %s162, %s164
      %p171 = scmp.eq.s32.totalorder %s28, 1
      %p172 = por %p170, %p171
      %p173 = scmp.ne.s32.totalorder %s164, %s165
      %p174 = scmp.eq.s32.totalorder %s28, 0
      %p175 = por %p173, %p174
      %p176 = scmp.ne.s32.totalorder %s164, %s165
      %p177 = scmp.eq.s32.totalorder %s29, 1
      %p178 = por %p176, %p177
      %p180 = scmp.ne.s32.totalorder %s165, %s179
      %p181 = scmp.eq.s32.totalorder %s29, 0
      %p182 = por %p180, %p181
      %s184 = sadd.s32 %s183, 1
      %p187 = scmp.eq.s32.totalorder %s23, 1
      %p188 = scmp.ne.s32.totalorder %s183, %s185
      %p189 = scmp.eq.s32.totalorder %s23, 0
      %p190 = por %p188, %p189
      %p191 = scmp.ne.s32.totalorder %s183, %s185
      %p192 = scmp.eq.s32.totalorder %s28, 1
      %p193 = por %p191, %p192
      %p194 = scmp.ne.s32.totalorder %s185, %s186
      %p195 = scmp.eq.s32.totalorder %s28, 0
      %p196 = por %p194, %p195
      %p197 = scmp.ne.s32.totalorder %s185, %s186
      %p198 = scmp.eq.s32.totalorder %s29, 1
      %p199 = por %p197, %p198
      %p201 = scmp.ne.s32.totalorder %s186, %s200
      %p202 = scmp.eq.s32.totalorder %s29, 0
      %p203 = por %p201, %p202
      %s204 = ssub.s32 %s23, %s30
      %p205 = scmp.eq.s32.totalorder %s204, 0
      %s207 = sadd.s32 %s206, 1
      %s208 = scalar_select %p205, %s206, %s207
      %p211 = pneg %p205
      %p212 = scmp.eq.s32.totalorder %s23, 1
      %p213 = por %p211, %p212
      %p214 = scmp.ne.s32.totalorder %s206, %s209
      %p215 = scmp.eq.s32.totalorder %s23, 0
      %p216 = por %p214, %p215
      %p217 = scmp.ne.s32.totalorder %s206, %s209
      %p218 = scmp.eq.s32.totalorder %s28, 1
      %p219 = por %p217, %p218
      %p220 = scmp.ne.s32.totalorder %s209, %s210
      %p221 = scmp.eq.s32.totalorder %s28, 0
      %p222 = por %p220, %p221
      %p223 = scmp.ne.s32.totalorder %s209, %s210
      %p224 = scmp.eq.s32.totalorder %s29, 1
      %p225 = por %p223, %p224
      %p227 = scmp.ne.s32.totalorder %s210, %s226
      %p228 = scmp.eq.s32.totalorder %s29, 0
      %p229 = por %p227, %p228
      %p230 = scmp.le.s32.totalorder 1, %s23
      %p231 = scmp.lt.s32.totalorder %s23, 3
      %p232 = pnand %p230, %p231
      %p233 = pneg %p232
      // Predicated region
      $region9: #{tpu_custom_call.1} parent=5 // pred_check
        _
      $region10: #{tpu_custom_call.1} parent=5 // pred_check_branch
        %235 = sbr.rel (%p232) target = $region12
      $region11: #{tpu_custom_call.1} parent=5 // pred_region
        %s236 = ssub.s32 %s23, 1
        // Predicated region
        $region13: #{tpu_custom_call.1} parent=11 // pred_check
          %p237 = pneg %p70
        $region14: #{tpu_custom_call.1} parent=11 // pred_check_branch
          %239 = sbr.rel (%p237) target = $region16
        $region15: #{tpu_custom_call.1} parent=11 // pred_region
          %241 = vsyncadd [#allocation7], 0
          %s242 = sshll.u32 %s1, 4
          %s243 = int_to_ptr.hbm [resolvable:$true] %s242
          %s244 = sshll.u32 [#allocation6], 4
          %s245 = int_to_ptr.vmem [resolvable:$true] %s244
          %250 = dma.hbm_to_vmem [thread:$0]  %s243, 4608, %s245, [#allocation7], 128, 128, 8
        $region16: #{tpu_custom_call.1} parent=11 // pred_fallthru
          _
        // Predicated region
        $region17: #{tpu_custom_call.1} parent=11 // pred_check
          %p251 = pneg %p91
        $region18: #{tpu_custom_call.1} parent=11 // pred_check_branch
          %253 = sbr.rel (%p251) target = $region20
        $region19: #{tpu_custom_call.1} parent=11 // pred_region
          %255 = vsyncadd [#allocation7], 0
          %s256 = sshll.u32 %s2, 4
          %s257 = int_to_ptr.hbm [resolvable:$true] %s256
          %s258 = sshll.u32 [#allocation8], 4
          %s259 = int_to_ptr.vmem [resolvable:$true] %s258
          %264 = dma.hbm_to_vmem [thread:$0]  %s257, 4608, %s259, [#allocation7], 128, 128, 8
        $region20: #{tpu_custom_call.1} parent=11 // pred_fallthru
          _
        // Predicated region
        $region21: #{tpu_custom_call.1} parent=11 // pred_check
          %p265 = pneg %p112
        $region22: #{tpu_custom_call.1} parent=11 // pred_check_branch
          %267 = sbr.rel (%p265) target = $region24
        $region23: #{tpu_custom_call.1} parent=11 // pred_region
          %269 = vsyncadd [#allocation10], 0
          %s270 = sshll.u32 %s3, 4
          %s271 = int_to_ptr.hbm [resolvable:$true] %s270
          %s272 = sshll.u32 [#allocation9], 4
          %s273 = int_to_ptr.vmem [resolvable:$true] %s272
          %278 = dma.hbm_to_vmem [thread:$0]  %s271, 4608, %s273, [#allocation10], 128, 128, 8
        $region24: #{tpu_custom_call.1} parent=11 // pred_fallthru
          _
        // Predicated region
        $region25: #{tpu_custom_call.1} parent=11 // pred_check
          %p279 = pneg %p133
        $region26: #{tpu_custom_call.1} parent=11 // pred_check_branch
          %281 = sbr.rel (%p279) target = $region28
        $region27: #{tpu_custom_call.1} parent=11 // pred_region
          %283 = vsyncadd [#allocation10], 0
          %s285 = sshll.u32 %s4, 4
          %s286 = int_to_ptr.hbm [resolvable:$true] %s285
          %s287 = sshll.u32 [#allocation11], 4
          %s288 = int_to_ptr.vmem [resolvable:$true] %s287
          %290 = dma.hbm_to_vmem [thread:$0]  %s286, 64, %s288, [#allocation10]
        $region28: #{tpu_custom_call.1} parent=11 // pred_fallthru
          _
        // Predicated region
        $region29: #{tpu_custom_call.1} parent=11 // pred_check
          %p291 = pneg %p154
        $region30: #{tpu_custom_call.1} parent=11 // pred_check_branch
          %293 = sbr.rel (%p291) target = $region32
        $region31: #{tpu_custom_call.1} parent=11 // pred_region
          _
        $region32: #{tpu_custom_call.1} parent=11 // pred_fallthru
          _
        // Predicated region
        $region33: #{tpu_custom_call.1} parent=11 // pred_check
          %p294 = pneg %p175
        $region34: #{tpu_custom_call.1} parent=11 // pred_check_branch
          %296 = sbr.rel (%p294) target = $region36
        $region35: #{tpu_custom_call.1} parent=11 // pred_region
          %298 = vsyncadd [#allocation13], 0
          %s299 = sshll.u32 %s6, 4
          %s300 = int_to_ptr.hbm [resolvable:$true] %s299
          %s301 = sshll.u32 [#allocation12], 4
          %s302 = int_to_ptr.vmem [resolvable:$true] %s301
          %307 = dma.hbm_to_vmem [thread:$0]  %s300, 512, %s302, [#allocation13], 128, 128, 8
        $region36: #{tpu_custom_call.1} parent=11 // pred_fallthru
          _
        // Predicated region
        $region37: #{tpu_custom_call.1} parent=11 // pred_check
          %p308 = pneg %p196
        $region38: #{tpu_custom_call.1} parent=11 // pred_check_branch
          %310 = sbr.rel (%p308) target = $region40
        $region39: #{tpu_custom_call.1} parent=11 // pred_region
          _
        $region40: #{tpu_custom_call.1} parent=11 // pred_fallthru
          _
      $region12: #{tpu_custom_call.1} parent=5 // pred_fallthru
        _
      %p311 = scmp.lt.s32.totalorder %s23, 2
      // Predicated region
      $region41: #{tpu_custom_call.1} parent=5 // pred_check
        %p312 = pneg %p311
      $region42: #{tpu_custom_call.1} parent=5 // pred_check_branch
        %314 = sbr.rel (%p312) target = $region44
      $region43: #{tpu_custom_call.1} parent=5 // pred_region
        // Predicated region
        $region45: #{tpu_custom_call.1} parent=43 // pred_check
          %p315 = pneg %p43
        $region46: #{tpu_custom_call.1} parent=43 // pred_check_branch
          %317 = sbr.rel (%p315) target = $region48
        $region47: #{tpu_custom_call.1} parent=43 // pred_region
          %s318 = sand.u32 %s33, 1
          %s319 = scalar_lea.sflag [#allocation4], %s318
          %s320 = sand.u32 %s33, 1
          %s321 = smul.addr %s320, 16
          %s322 = scalar_lea.vmem [#allocation3], %s321
          %324 = vsyncadd %s319, 0
          %s325 = smul.addr %s23, 4
          %s326 = smul.addr %s325, 4
          %s327 = scalar_lea.hbm %s0, %s326
          %s328 = sshll.u32 %s327, 4
          %s329 = int_to_ptr.hbm [resolvable:$true] %s328
          %s330 = sshll.u32 %s322, 4
          %s331 = int_to_ptr.vmem [resolvable:$true] %s330
          %336 = dma.hbm_to_vmem [thread:$0]  %s329, 256, %s331, %s319, 64, 64, 4
        $region48: #{tpu_custom_call.1} parent=43 // pred_fallthru
          _
      $region44: #{tpu_custom_call.1} parent=5 // pred_fallthru
        _
      %p337 = scmp.le.s32.totalorder 1, %s23
      %p338 = scmp.lt.s32.totalorder %s23, 3
      %p339 = pnand %p337, %p338
      %p340 = pneg %p339
      // Predicated region
      $region49: #{tpu_custom_call.1} parent=5 // pred_check
        _
      $region50: #{tpu_custom_call.1} parent=5 // pred_check_branch
        %342 = sbr.rel (%p339) target = $region52
      $region51: #{tpu_custom_call.1} parent=5 // pred_region
        %s343 = ssub.s32 %s23, 1
        %s344 = sand.u32 %s36, 1
        %s345 = scalar_lea.sflag [#allocation4], %s344
        %s346 = sand.u32 %s36, 1
        %s347 = smul.addr %s346, 16
        %s348 = scalar_lea.vmem [#allocation3], %s347
        // Predicated region
        $region53: #{tpu_custom_call.1} parent=51 // pred_check
          %p349 = pneg %p49
        $region54: #{tpu_custom_call.1} parent=51 // pred_check_branch
          %351 = sbr.rel (%p349) target = $region56
        $region55: #{tpu_custom_call.1} parent=51 // pred_region
          %353 = dma.done %s345, 256
        $region56: #{tpu_custom_call.1} parent=51 // pred_fallthru
          _
        // Predicated region
        $region57: #{tpu_custom_call.1} parent=51 // pred_check
          %p354 = pneg %p70
        $region58: #{tpu_custom_call.1} parent=51 // pred_check_branch
          %356 = sbr.rel (%p354) target = $region60
        $region59: #{tpu_custom_call.1} parent=51 // pred_region
          %358 = dma.done [#allocation7], 4608
        $region60: #{tpu_custom_call.1} parent=51 // pred_fallthru
          _
        // Predicated region
        $region61: #{tpu_custom_call.1} parent=51 // pred_check
          %p359 = pneg %p91
        $region62: #{tpu_custom_call.1} parent=51 // pred_check_branch
          %361 = sbr.rel (%p359) target = $region64
        $region63: #{tpu_custom_call.1} parent=51 // pred_region
          %363 = dma.done [#allocation7], 4608
        $region64: #{tpu_custom_call.1} parent=51 // pred_fallthru
          _
        // Predicated region
        $region65: #{tpu_custom_call.1} parent=51 // pred_check
          %p364 = pneg %p112
        $region66: #{tpu_custom_call.1} parent=51 // pred_check_branch
          %366 = sbr.rel (%p364) target = $region68
        $region67: #{tpu_custom_call.1} parent=51 // pred_region
          %368 = dma.done [#allocation10], 4608
        $region68: #{tpu_custom_call.1} parent=51 // pred_fallthru
          _
        // Predicated region
        $region69: #{tpu_custom_call.1} parent=51 // pred_check
          %p369 = pneg %p133
        $region70: #{tpu_custom_call.1} parent=51 // pred_check_branch
          %371 = sbr.rel (%p369) target = $region72
        $region71: #{tpu_custom_call.1} parent=51 // pred_region
          %373 = dma.done [#allocation10], 64
        $region72: #{tpu_custom_call.1} parent=51 // pred_fallthru
          _
        // Predicated region
        $region73: #{tpu_custom_call.1} parent=51 // pred_check
          %p374 = pneg %p175
        $region74: #{tpu_custom_call.1} parent=51 // pred_check_branch
          %376 = sbr.rel (%p374) target = $region76
        $region75: #{tpu_custom_call.1} parent=51 // pred_region
          %378 = dma.done [#allocation13], 512
        $region76: #{tpu_custom_call.1} parent=51 // pred_fallthru
          _
        %s379 = sand.u32 %s36, 1
        %s380 = scalar_lea.sflag [#allocation4], %s379
        %s381 = sand.u32 %s36, 1
        %s382 = smul.addr %s381, 16
        %s383 = scalar_lea.vmem [#allocation3], %s382
        %p384 = pneg %p49
        %p385 = pneg %p46
        %p386 = pneg %p70
        %p387 = pneg %p67
        %p388 = pneg %p91
        %p389 = pneg %p88
        %p390 = pneg %p112
        %p391 = pneg %p109
        %p392 = pneg %p133
        %p393 = pneg %p130
        %p394 = pneg %p154
        %p395 = pneg %p151
        %p396 = pneg %p175
        %p397 = pneg %p172
        %p398 = pneg %p196
        %p399 = pneg %p193
        %p400 = pneg %p222
        %p401 = pneg %p219
        %s402 = sand.u32 %s209, 1
        %s403 = scalar_lea.sflag [#allocation5], %s402
        %s404 = sand.u32 %s209, 1
        %s405 = scalar_lea.vmem [#allocation14], %s404
        %v406 = vld [vmem:[%s348] sm:$0xf]
        %v407 = vld [vmem:[%s348 + $0x4] sm:$0xf]
        %v408 = vld [vmem:[%s348 + $0x8] sm:$0xf]
        %v409 = vld [vmem:[%s348 + $0xc] sm:$0xf]
        %v410 = vld [vmem:[#allocation11] sm:$0x1]
        %v411 = vld [vmem:[%s5] sm:$0x1]
        %vm412 = vcmask 259072
        %413 = vst.msk [vmem:[#allocation2] sm:$0x3f] %vm412, 0.0
        %414 = vst.msk [vmem:[#allocation2 + $0x8] sm:$0x3f] %vm412, 0.0
        %415 = vst.msk [vmem:[#allocation2 + $0x10] sm:$0x3f] %vm412, 0.0
        %416 = vst.msk [vmem:[#allocation2 + $0x18] sm:$0x3f] %vm412, 0.0
        %417 = vst.msk [vmem:[#allocation2 + $0x20] sm:$0x3f] %vm412, 0.0
        %418 = vst.msk [vmem:[#allocation2 + $0x28] sm:$0x3f] %vm412, 0.0
        %s419 = scalar_lea.vmem [#allocation2], 8
        %vm420 = vcmask 257024
        %421 = vst.msk [vmem:[%s419 + $0x1] sm:$0xf] %vm420, %v406
        %422 = vst.msk [vmem:[%s419 + $0x9] sm:$0xf] %vm420, %v407
        %423 = vst.msk [vmem:[%s419 + $0x11] sm:$0xf] %vm420, %v408
        %424 = vst.msk [vmem:[%s419 + $0x19] sm:$0xf] %vm420, %v409
        %v425 = vld [vmem:[#allocation2] sm:$0x3f]
        %v426 = vld [vmem:[#allocation2 + $0x8] sm:$0x3f]
        %v427 = vld [vmem:[#allocation2 + $0x10] sm:$0x3f]
        %v428 = vld [vmem:[#allocation2 + $0x18] sm:$0x3f]
        %v429 = vld [vmem:[#allocation2 + $0x20] sm:$0x3f]
        %v430 = vld [vmem:[#allocation2 + $0x28] sm:$0x3f]
        %v431 = vld [vmem:[#allocation6] sm:$0xff]
        %v432 = vld [vmem:[#allocation6 + $0x8] sm:$0xff]
        %v433 = vld [vmem:[#allocation6 + $0x10] sm:$0xff]
        %v434 = vld [vmem:[#allocation6 + $0x18] sm:$0xff]
        %v439 = vrot.slane %v425, 4
        %v440 = vrot.slane %v426, 4
        %v441 = vrot.slane %v427, 4
        %v442 = vrot.slane %v428, 4
        %vm443 = vcmask 1042432
        %vm444 = vcmask 1046532
        %vm445 = vmor %vm443, %vm444
        %v446 = vrot.slane %v425, 5
        %v447 = vrot.slane %v446, 4
        %v448 = vrot.slane %v439, 5
        %v449 = vsel %vm445, %v447, %v448
        %v450 = vrot.slane %v426, 5
        %v451 = vrot.slane %v450, 4
        %v452 = vrot.slane %v440, 5
        %v453 = vsel %vm445, %v451, %v452
        %v454 = vrot.slane %v427, 5
        %v455 = vrot.slane %v454, 4
        %v456 = vrot.slane %v441, 5
        %v457 = vsel %vm445, %v455, %v456
        %v458 = vrot.slane %v428, 5
        %v459 = vrot.slane %v458, 4
        %v460 = vrot.slane %v442, 5
        %v461 = vsel %vm445, %v459, %v460
        %s462 = scalar_lea.vmem [#allocation6], 32
        %v463 = vld [vmem:[%s462] sm:$0xff]
        %v464 = vld [vmem:[%s462 + $0x8] sm:$0xff]
        %v465 = vld [vmem:[%s462 + $0x10] sm:$0xff]
        %v466 = vld [vmem:[%s462 + $0x18] sm:$0xff]
        %467 = vst [vmem:[#allocation1] ss:$2 sm:$0xff] %v449
        %s468 = scalar_lea.vmem [#allocation1], 1
        %469 = vst [vmem:[%s468] ss:$2 sm:$0xff] %v453
        %s470 = scalar_lea.vmem [#allocation1], 16
        %471 = vst [vmem:[%s470] ss:$2 sm:$0xff] %v457
        %s472 = scalar_lea.vmem [#allocation1], 17
        %473 = vst [vmem:[%s472] ss:$2 sm:$0xff] %v461
        %v474 = vld.sshfl [vmem:[#allocation1] sm:$0xff pattern:$0x75316420]
        %v475 = vld.sshfl [vmem:[#allocation1 + $0x10] sm:$0xff pattern:$0x75316420]
        %vm476 = vcmask 261120
        %v477 = vsel %vm476, %v474, 0
        %v479 = vsel %vm476, %v475, 0
        %481 = vmatpush.msra.mxu0 0.0
        %482 = vmatpush.msra.mxu0 0.0
        %483 = vmatpush.msra.mxu0 0.0
        %484 = vmatpush.msra.mxu0 0.0
        %485 = vmatpush.msra.mxu0 0.0
        %486 = vmatpush.msra.mxu0 0.0
        %487 = vmatpush.msra.mxu0 0.0
        %488 = vmatpush.msra.mxu0 0.0
        %489 = vmatpush.msra.mxu0 0.0
        %490 = vmatpush.msra.mxu0 0.0
        %491 = vmatpush.msra.mxu0 0.0
        %492 = vmatpush.msra.mxu0 0.0
        %493 = vmatpush.msra.mxu0 %v466
        %494 = vmatpush.msra.mxu0 %v465
        %495 = vmatpush.msra.mxu0 %v464
        %496 = vmatpush.msra.mxu0 %v463
        %497 = vmatmul.f32.gmra.mxu0 %v477
        %v498 = vpop.f32.mrf.mxu0
        %v499 = vadd.f32 0.0, %v498
        %500 = vmatmul.f32.gmra.mxu0 %v479
        %v501 = vpop.f32.mrf.mxu0
        %v502 = vadd.f32 0.0, %v501
        %503 = vdwg.mxu0
        %504 = vst [vmem:[#allocation1] ss:$2 sm:$0xff] %v425
        %s505 = scalar_lea.vmem [#allocation1], 1
        %506 = vst [vmem:[%s505] ss:$2 sm:$0xff] %v426
        %s507 = scalar_lea.vmem [#allocation1], 16
        %508 = vst [vmem:[%s507] ss:$2 sm:$0xff] %v427
        %s509 = scalar_lea.vmem [#allocation1], 17
        %510 = vst [vmem:[%s509] ss:$2 sm:$0xff] %v428
        %v511 = vld.sshfl [vmem:[#allocation1] sm:$0xff pattern:$0x75316420]
        %v512 = vld.sshfl [vmem:[#allocation1 + $0x10] sm:$0xff pattern:$0x75316420]
        %v513 = vsel %vm476, %v511, 0
        %v515 = vsel %vm476, %v512, 0
        %517 = vmatpush.msra.mxu0 0.0
        %518 = vmatpush.msra.mxu0 0.0
        %519 = vmatpush.msra.mxu0 0.0
        %520 = vmatpush.msra.mxu0 0.0
        %521 = vmatpush.msra.mxu0 0.0
        %522 = vmatpush.msra.mxu0 0.0
        %523 = vmatpush.msra.mxu0 0.0
        %524 = vmatpush.msra.mxu0 0.0
        %525 = vmatpush.msra.mxu0 0.0
        %526 = vmatpush.msra.mxu0 0.0
        %527 = vmatpush.msra.mxu0 0.0
        %528 = vmatpush.msra.mxu0 0.0
        %529 = vmatpush.msra.mxu0 %v434
        %530 = vmatpush.msra.mxu0 %v433
        %531 = vmatpush.msra.mxu0 %v432
        %532 = vmatpush.msra.mxu0 %v431
        %533 = vmatmul.f32.gmra.mxu0 %v513
        %v534 = vpop.f32.mrf.mxu0
        %v535 = vadd.f32 %v499, %v534
        %536 = vmatmul.f32.gmra.mxu0 %v515
        %v537 = vpop.f32.mrf.mxu0
        %v538 = vadd.f32 %v502, %v537
        %539 = vdwg.mxu0
        %vm540 = vcmask 1041408
        %vm541 = vcmask 1045508
        %vm542 = vmor %vm540, %vm541
        %v543 = vrot.slane %v425, 6
        %v544 = vrot.slane %v543, 4
        %v545 = vrot.slane %v439, 6
        %v546 = vsel %vm542, %v544, %v545
        %v547 = vrot.slane %v426, 6
        %v548 = vrot.slane %v547, 4
        %v549 = vrot.slane %v440, 6
        %v550 = vsel %vm542, %v548, %v549
        %v551 = vrot.slane %v427, 6
        %v552 = vrot.slane %v551, 4
        %v553 = vrot.slane %v441, 6
        %v554 = vsel %vm542, %v552, %v553
        %v555 = vrot.slane %v428, 6
        %v556 = vrot.slane %v555, 4
        %v557 = vrot.slane %v442, 6
        %v558 = vsel %vm542, %v556, %v557
        %s559 = scalar_lea.vmem [#allocation6], 64
        %v560 = vld [vmem:[%s559] sm:$0xff]
        %v561 = vld [vmem:[%s559 + $0x8] sm:$0xff]
        %v562 = vld [vmem:[%s559 + $0x10] sm:$0xff]
        %v563 = vld [vmem:[%s559 + $0x18] sm:$0xff]
        %564 = vst [vmem:[#allocation1] ss:$2 sm:$0xff] %v546
        %s565 = scalar_lea.vmem [#allocation1], 1
        %566 = vst [vmem:[%s565] ss:$2 sm:$0xff] %v550
        %s567 = scalar_lea.vmem [#allocation1], 16
        %568 = vst [vmem:[%s567] ss:$2 sm:$0xff] %v554
        %s569 = scalar_lea.vmem [#allocation1], 17
        %570 = vst [vmem:[%s569] ss:$2 sm:$0xff] %v558
        %v571 = vld.sshfl [vmem:[#allocation1] sm:$0xff pattern:$0x75316420]
        %v572 = vld.sshfl [vmem:[#allocation1 + $0x10] sm:$0xff pattern:$0x75316420]
        %v573 = vsel %vm476, %v571, 0
        %v575 = vsel %vm476, %v572, 0
        %577 = vmatpush.msra.mxu0 0.0
        %578 = vmatpush.msra.mxu0 0.0
        %579 = vmatpush.msra.mxu0 0.0
        %580 = vmatpush.msra.mxu0 0.0
        %581 = vmatpush.msra.mxu0 0.0
        %582 = vmatpush.msra.mxu0 0.0
        %583 = vmatpush.msra.mxu0 0.0
        %584 = vmatpush.msra.mxu0 0.0
        %585 = vmatpush.msra.mxu0 0.0
        %586 = vmatpush.msra.mxu0 0.0
        %587 = vmatpush.msra.mxu0 0.0
        %588 = vmatpush.msra.mxu0 0.0
        %589 = vmatpush.msra.mxu0 %v563
        %590 = vmatpush.msra.mxu0 %v562
        %591 = vmatpush.msra.mxu0 %v561
        %592 = vmatpush.msra.mxu0 %v560
        %593 = vmatmul.f32.gmra.mxu0 %v573
        %v594 = vpop.f32.mrf.mxu0
        %v595 = vadd.f32 0.0, %v594
        %596 = vmatmul.f32.gmra.mxu0 %v575
        %v597 = vpop.f32.mrf.mxu0
        %v598 = vadd.f32 0.0, %v597
        %599 = vdwg.mxu0
        %v600 = vadd.f32 %v535, %v595
        %v601 = vadd.f32 %v538, %v598
        %s602 = scalar_lea.vmem [#allocation6], 96
        %v603 = vld [vmem:[%s602] sm:$0xff]
        %v604 = vld [vmem:[%s602 + $0x8] sm:$0xff]
        %v605 = vld [vmem:[%s602 + $0x10] sm:$0xff]
        %v606 = vld [vmem:[%s602 + $0x18] sm:$0xff]
        %608 = vst [vmem:[#allocation1] ss:$2 sm:$0xff] %v426
        %s609 = scalar_lea.vmem [#allocation1], 1
        %610 = vst [vmem:[%s609] ss:$2 sm:$0xff] %v427
        %s611 = scalar_lea.vmem [#allocation1], 16
        %612 = vst [vmem:[%s611] ss:$2 sm:$0xff] %v428
        %s613 = scalar_lea.vmem [#allocation1], 17
        %614 = vst [vmem:[%s613] ss:$2 sm:$0xff] %v429
        %v615 = vld.sshfl [vmem:[#allocation1] sm:$0xff pattern:$0x75316420]
        %v616 = vld.sshfl [vmem:[#allocation1 + $0x10] sm:$0xff pattern:$0x75316420]
        %v617 = vsel %vm476, %v615, 0
        %v619 = vsel %vm476, %v616, 0
        %621 = vmatpush.msra.mxu0 0.0
        %622 = vmatpush.msra.mxu0 0.0
        %623 = vmatpush.msra.mxu0 0.0
        %624 = vmatpush.msra.mxu0 0.0
        %625 = vmatpush.msra.mxu0 0.0
        %626 = vmatpush.msra.mxu0 0.0
        %627 = vmatpush.msra.mxu0 0.0
        %628 = vmatpush.msra.mxu0 0.0
        %629 = vmatpush.msra.mxu0 0.0
        %630 = vmatpush.msra.mxu0 0.0
        %631 = vmatpush.msra.mxu0 0.0
        %632 = vmatpush.msra.mxu0 0.0
        %633 = vmatpush.msra.mxu0 %v606
        %634 = vmatpush.msra.mxu0 %v605
        %635 = vmatpush.msra.mxu0 %v604
        %636 = vmatpush.msra.mxu0 %v603
        %637 = vmatmul.f32.gmra.mxu0 %v617
        %v638 = vpop.f32.mrf.mxu0
        %v639 = vadd.f32 0.0, %v638
        %640 = vmatmul.f32.gmra.mxu0 %v619
        %v641 = vpop.f32.mrf.mxu0
        %v642 = vadd.f32 0.0, %v641
        %643 = vdwg.mxu0
        %v644 = vadd.f32 %v600, %v639
        %v645 = vadd.f32 %v601, %v642
        %v646 = vrot.slane %v429, 4
        %v647 = vrot.slane %v429, 5
        %v648 = vrot.slane %v647, 4
        %v649 = vrot.slane %v646, 5
        %v650 = vsel %vm445, %v648, %v649
        %s651 = scalar_lea.vmem [#allocation6], 128
        %v652 = vld [vmem:[%s651] sm:$0xff]
        %v653 = vld [vmem:[%s651 + $0x8] sm:$0xff]
        %v654 = vld [vmem:[%s651 + $0x10] sm:$0xff]
        %v655 = vld [vmem:[%s651 + $0x18] sm:$0xff]
        %656 = vst [vmem:[#allocation1] ss:$2 sm:$0xff] %v453
        %s657 = scalar_lea.vmem [#allocation1], 1
        %658 = vst [vmem:[%s657] ss:$2 sm:$0xff] %v457
        %s659 = scalar_lea.vmem [#allocation1], 16
        %660 = vst [vmem:[%s659] ss:$2 sm:$0xff] %v461
        %s661 = scalar_lea.vmem [#allocation1], 17
        %662 = vst [vmem:[%s661] ss:$2 sm:$0xff] %v650
        %v663 = vld.sshfl [vmem:[#allocation1] sm:$0xff pattern:$0x75316420]
        %v664 = vld.sshfl [vmem:[#allocation1 + $0x10] sm:$0xff pattern:$0x75316420]
        %v665 = vsel %vm476, %v663, 0
        %v667 = vsel %vm476, %v664, 0
        %669 = vmatpush.msra.mxu0 0.0
        %670 = vmatpush.msra.mxu0 0.0
        %671 = vmatpush.msra.mxu0 0.0
        %672 = vmatpush.msra.mxu0 0.0
        %673 = vmatpush.msra.mxu0 0.0
        %674 = vmatpush.msra.mxu0 0.0
        %675 = vmatpush.msra.mxu0 0.0
        %676 = vmatpush.msra.mxu0 0.0
        %677 = vmatpush.msra.mxu0 0.0
        %678 = vmatpush.msra.mxu0 0.0
        %679 = vmatpush.msra.mxu0 0.0
        %680 = vmatpush.msra.mxu0 0.0
        %681 = vmatpush.msra.mxu0 %v655
        %682 = vmatpush.msra.mxu0 %v654
        %683 = vmatpush.msra.mxu0 %v653
        %684 = vmatpush.msra.mxu0 %v652
        %685 = vmatmul.f32.gmra.mxu0 %v665
        %v686 = vpop.f32.mrf.mxu0
        %v687 = vadd.f32 0.0, %v686
        %688 = vmatmul.f32.gmra.mxu0 %v667
        %v689 = vpop.f32.mrf.mxu0
        %v690 = vadd.f32 0.0, %v689
        %691 = vdwg.mxu0
        %v692 = vadd.f32 %v644, %v687
        %v693 = vadd.f32 %v645, %v690
        %v694 = vrot.slane %v429, 6
        %v695 = vrot.slane %v694, 4
        %v696 = vrot.slane %v646, 6
        %v697 = vsel %vm542, %v695, %v696
        %s698 = scalar_lea.vmem [#allocation6], 160
        %v699 = vld [vmem:[%s698] sm:$0xff]
        %v700 = vld [vmem:[%s698 + $0x8] sm:$0xff]
        %v701 = vld [vmem:[%s698 + $0x10] sm:$0xff]
        %v702 = vld [vmem:[%s698 + $0x18] sm:$0xff]
        %703 = vst [vmem:[#allocation1] ss:$2 sm:$0xff] %v550
        %s704 = scalar_lea.vmem [#allocation1], 1
        %705 = vst [vmem:[%s704] ss:$2 sm:$0xff] %v554
        %s706 = scalar_lea.vmem [#allocation1], 16
        %707 = vst [vmem:[%s706] ss:$2 sm:$0xff] %v558
        %s708 = scalar_lea.vmem [#allocation1], 17
        %709 = vst [vmem:[%s708] ss:$2 sm:$0xff] %v697
        %v710 = vld.sshfl [vmem:[#allocation1] sm:$0xff pattern:$0x75316420]
        %v711 = vld.sshfl [vmem:[#allocation1 + $0x10] sm:$0xff pattern:$0x75316420]
        %v712 = vsel %vm476, %v710, 0
        %v714 = vsel %vm476, %v711, 0
        %716 = vmatpush.msra.mxu0 0.0
        %717 = vmatpush.msra.mxu0 0.0
        %718 = vmatpush.msra.mxu0 0.0
        %719 = vmatpush.msra.mxu0 0.0
        %720 = vmatpush.msra.mxu0 0.0
        %721 = vmatpush.msra.mxu0 0.0
        %722 = vmatpush.msra.mxu0 0.0
        %723 = vmatpush.msra.mxu0 0.0
        %724 = vmatpush.msra.mxu0 0.0
        %725 = vmatpush.msra.mxu0 0.0
        %726 = vmatpush.msra.mxu0 0.0
        %727 = vmatpush.msra.mxu0 0.0
        %728 = vmatpush.msra.mxu0 %v702
        %729 = vmatpush.msra.mxu0 %v701
        %730 = vmatpush.msra.mxu0 %v700
        %731 = vmatpush.msra.mxu0 %v699
        %732 = vmatmul.f32.gmra.mxu0 %v712
        %v733 = vpop.f32.mrf.mxu0
        %v734 = vadd.f32 0.0, %v733
        %735 = vmatmul.f32.gmra.mxu0 %v714
        %v736 = vpop.f32.mrf.mxu0
        %v737 = vadd.f32 0.0, %v736
        %738 = vdwg.mxu0
        %v739 = vadd.f32 %v692, %v734
        %v740 = vadd.f32 %v693, %v737
        %s741 = scalar_lea.vmem [#allocation6], 192
        %v742 = vld [vmem:[%s741] sm:$0xff]
        %v743 = vld [vmem:[%s741 + $0x8] sm:$0xff]
        %v744 = vld [vmem:[%s741 + $0x10] sm:$0xff]
        %v745 = vld [vmem:[%s741 + $0x18] sm:$0xff]
        %747 = vst [vmem:[#allocation1] ss:$2 sm:$0xff] %v427
        %s748 = scalar_lea.vmem [#allocation1], 1
        %749 = vst [vmem:[%s748] ss:$2 sm:$0xff] %v428
        %s750 = scalar_lea.vmem [#allocation1], 16
        %751 = vst [vmem:[%s750] ss:$2 sm:$0xff] %v429
        %s752 = scalar_lea.vmem [#allocation1], 17
        %753 = vst [vmem:[%s752] ss:$2 sm:$0xff] %v430
        %v754 = vld.sshfl [vmem:[#allocation1] sm:$0xff pattern:$0x75316420]
        %v755 = vld.sshfl [vmem:[#allocation1 + $0x10] sm:$0xff pattern:$0x75316420]
        %v756 = vsel %vm476, %v754, 0
        %v758 = vsel %vm476, %v755, 0
        %760 = vmatpush.msra.mxu0 0.0
        %761 = vmatpush.msra.mxu0 0.0
        %762 = vmatpush.msra.mxu0 0.0
        %763 = vmatpush.msra.mxu0 0.0
        %764 = vmatpush.msra.mxu0 0.0
        %765 = vmatpush.msra.mxu0 0.0
        %766 = vmatpush.msra.mxu0 0.0
        %767 = vmatpush.msra.mxu0 0.0
        %768 = vmatpush.msra.mxu0 0.0
        %769 = vmatpush.msra.mxu0 0.0
        %770 = vmatpush.msra.mxu0 0.0
        %771 = vmatpush.msra.mxu0 0.0
        %772 = vmatpush.msra.mxu0 %v745
        %773 = vmatpush.msra.mxu0 %v744
        %774 = vmatpush.msra.mxu0 %v743
        %775 = vmatpush.msra.mxu0 %v742
        %776 = vmatmul.f32.gmra.mxu0 %v756
        %v777 = vpop.f32.mrf.mxu0
        %v778 = vadd.f32 0.0, %v777
        %779 = vmatmul.f32.gmra.mxu0 %v758
        %v780 = vpop.f32.mrf.mxu0
        %v781 = vadd.f32 0.0, %v780
        %782 = vdwg.mxu0
        %v783 = vadd.f32 %v739, %v778
        %v784 = vadd.f32 %v740, %v781
        %v785 = vrot.slane %v430, 4
        %v786 = vrot.slane %v430, 5
        %v787 = vrot.slane %v786, 4
        %v788 = vrot.slane %v785, 5
        %v789 = vsel %vm445, %v787, %v788
        %s790 = scalar_lea.vmem [#allocation6], 224
        %v791 = vld [vmem:[%s790] sm:$0xff]
        %v792 = vld [vmem:[%s790 + $0x8] sm:$0xff]
        %v793 = vld [vmem:[%s790 + $0x10] sm:$0xff]
        %v794 = vld [vmem:[%s790 + $0x18] sm:$0xff]
        %795 = vst [vmem:[#allocation1] ss:$2 sm:$0xff] %v457
        %s796 = scalar_lea.vmem [#allocation1], 1
        %797 = vst [vmem:[%s796] ss:$2 sm:$0xff] %v461
        %s798 = scalar_lea.vmem [#allocation1], 16
        %799 = vst [vmem:[%s798] ss:$2 sm:$0xff] %v650
        %s800 = scalar_lea.vmem [#allocation1], 17
        %801 = vst [vmem:[%s800] ss:$2 sm:$0xff] %v789
        %v802 = vld.sshfl [vmem:[#allocation1] sm:$0xff pattern:$0x75316420]
        %v803 = vld.sshfl [vmem:[#allocation1 + $0x10] sm:$0xff pattern:$0x75316420]
        %v804 = vsel %vm476, %v802, 0
        %v806 = vsel %vm476, %v803, 0
        %808 = vmatpush.msra.mxu0 0.0
        %809 = vmatpush.msra.mxu0 0.0
        %810 = vmatpush.msra.mxu0 0.0
        %811 = vmatpush.msra.mxu0 0.0
        %812 = vmatpush.msra.mxu0 0.0
        %813 = vmatpush.msra.mxu0 0.0
        %814 = vmatpush.msra.mxu0 0.0
        %815 = vmatpush.msra.mxu0 0.0
        %816 = vmatpush.msra.mxu0 0.0
        %817 = vmatpush.msra.mxu0 0.0
        %818 = vmatpush.msra.mxu0 0.0
        %819 = vmatpush.msra.mxu0 0.0
        %820 = vmatpush.msra.mxu0 %v794
        %821 = vmatpush.msra.mxu0 %v793
        %822 = vmatpush.msra.mxu0 %v792
        %823 = vmatpush.msra.mxu0 %v791
        %824 = vmatmul.f32.gmra.mxu0 %v804
        %v825 = vpop.f32.mrf.mxu0
        %v826 = vadd.f32 0.0, %v825
        %827 = vmatmul.f32.gmra.mxu0 %v806
        %v828 = vpop.f32.mrf.mxu0
        %v829 = vadd.f32 0.0, %v828
        %830 = vdwg.mxu0
        %v831 = vadd.f32 %v783, %v826
        %v832 = vadd.f32 %v784, %v829
        %v833 = vrot.slane %v430, 6
        %v834 = vrot.slane %v833, 4
        %v835 = vrot.slane %v785, 6
        %v836 = vsel %vm542, %v834, %v835
        %s837 = scalar_lea.vmem [#allocation6], 256
        %v838 = vld [vmem:[%s837] sm:$0xff]
        %v839 = vld [vmem:[%s837 + $0x8] sm:$0xff]
        %v840 = vld [vmem:[%s837 + $0x10] sm:$0xff]
        %v841 = vld [vmem:[%s837 + $0x18] sm:$0xff]
        %842 = vst [vmem:[#allocation1] ss:$2 sm:$0xff] %v554
        %s843 = scalar_lea.vmem [#allocation1], 1
        %844 = vst [vmem:[%s843] ss:$2 sm:$0xff] %v558
        %s845 = scalar_lea.vmem [#allocation1], 16
        %846 = vst [vmem:[%s845] ss:$2 sm:$0xff] %v697
        %s847 = scalar_lea.vmem [#allocation1], 17
        %848 = vst [vmem:[%s847] ss:$2 sm:$0xff] %v836
        %v849 = vld.sshfl [vmem:[#allocation1] sm:$0xff pattern:$0x75316420]
        %v850 = vld.sshfl [vmem:[#allocation1 + $0x10] sm:$0xff pattern:$0x75316420]
        %v851 = vsel %vm476, %v849, 0
        %v853 = vsel %vm476, %v850, 0
        %855 = vmatpush.msra.mxu0 0.0
        %856 = vmatpush.msra.mxu0 0.0
        %857 = vmatpush.msra.mxu0 0.0
        %858 = vmatpush.msra.mxu0 0.0
        %859 = vmatpush.msra.mxu0 0.0
        %860 = vmatpush.msra.mxu0 0.0
        %861 = vmatpush.msra.mxu0 0.0
        %862 = vmatpush.msra.mxu0 0.0
        %863 = vmatpush.msra.mxu0 0.0
        %864 = vmatpush.msra.mxu0 0.0
        %865 = vmatpush.msra.mxu0 0.0
        %866 = vmatpush.msra.mxu0 0.0
        %867 = vmatpush.msra.mxu0 %v841
        %868 = vmatpush.msra.mxu0 %v840
        %869 = vmatpush.msra.mxu0 %v839
        %870 = vmatpush.msra.mxu0 %v838
        %871 = vmatmul.f32.gmra.mxu0 %v851
        %v872 = vpop.f32.mrf.mxu0
        %v873 = vadd.f32 0.0, %v872
        %874 = vmatmul.f32.gmra.mxu0 %v853
        %v875 = vpop.f32.mrf.mxu0
        %v876 = vadd.f32 0.0, %v875
        %877 = vdwg.mxu0
        %v878 = vadd.f32 %v831, %v873
        %v879 = vadd.f32 %v832, %v876
        %v880 = vperm.slane %v410, 0
        %v881 = vmul.f32 %v878, %v880
        %v882 = vmul.f32 %v879, %v880
        %v883 = vperm.slane %v411, 0
        %v884 = vadd.f32 %v881, %v883
        %v885 = vadd.f32 %v882, %v883
        %vm886 = vcmp.gt.f32.partialorder %v884, 20.0
        %vm887 = vcmp.gt.f32.partialorder %v885, 20.0
        %v888 = vmin.f32 %v884, 20.0
        %v889 = vmin.f32 %v885, 20.0
        %v890 = vmul.f32 %v888, 1.442695
        %v891 = vpow.pop %v890
        %v892 = vmul.f32 %v889, 1.442695
        %v893 = vpow.pop %v892
        %v894 = vadd.f32 %v891, 1.0
        %v895 = vlog2.pop %v894
        %v896 = vmul.f32 %v895, 0.6931472
        %v897 = vmul.f32 -0.5, %v891
        %v898 = vadd.f32 %v897, 1.0
        %v899 = vmul.f32 %v898, %v891
        %v900 = vand.u32 2147483647, %v891
        %vm901 = vcmp.lt.f32.partialorder %v900, 0.0004427343
        %v902 = vsel %vm901, %v899, %v896
        %v903 = vadd.f32 %v893, 1.0
        %v904 = vlog2.pop %v903
        %v905 = vmul.f32 %v904, 0.6931472
        %v906 = vmul.f32 -0.5, %v893
        %v907 = vadd.f32 %v906, 1.0
        %v908 = vmul.f32 %v907, %v893
        %v909 = vand.u32 2147483647, %v893
        %vm910 = vcmp.lt.f32.partialorder %v909, 0.0004427343
        %v911 = vsel %vm910, %v908, %v905
        %v912 = vsel %vm886, %v884, %v902
        %v913 = vsel %vm887, %v885, %v911
        %v914 = vtanh.pop %v912
        %v915 = vtanh.pop %v913
        %v916 = vmul.f32 %v884, %v914
        %v917 = vmul.f32 %v885, %v915
        %v920 = vrot.slane %v916, 4
        %v921 = vrot.slane %v917, 4
        %v924 = vld [vmem:[#allocation11 + $0x1] sm:$0x1]
        %v925 = vld [vmem:[%s5 + $0x1] sm:$0x1]
        %926 = vst.msk [vmem:[#allocation2] sm:$0x3f] %vm412, 0.0
        %927 = vst.msk [vmem:[#allocation2 + $0x8] sm:$0x3f] %vm412, 0.0
        %928 = vst.msk [vmem:[#allocation2 + $0x10] sm:$0x3f] %vm412, 0.0
        %929 = vst.msk [vmem:[#allocation2 + $0x18] sm:$0x3f] %vm412, 0.0
        %930 = vst.msk [vmem:[#allocation2 + $0x20] sm:$0x3f] %vm412, 0.0
        %931 = vst.msk [vmem:[#allocation2 + $0x28] sm:$0x3f] %vm412, 0.0
        %932 = vst.msk [vmem:[%s419 + $0x1] sm:$0xf] %vm420, %v916
        %933 = vst.msk [vmem:[%s419 + $0x9] sm:$0xf] %vm420, %v920
        %934 = vst.msk [vmem:[%s419 + $0x11] sm:$0xf] %vm420, %v917
        %935 = vst.msk [vmem:[%s419 + $0x19] sm:$0xf] %vm420, %v921
        %v936 = vld [vmem:[#allocation2] sm:$0x3f]
        %v937 = vld [vmem:[#allocation2 + $0x8] sm:$0x3f]
        %v938 = vld [vmem:[#allocation2 + $0x10] sm:$0x3f]
        %v939 = vld [vmem:[#allocation2 + $0x18] sm:$0x3f]
        %v940 = vld [vmem:[#allocation2 + $0x20] sm:$0x3f]
        %v942 = vrot.slane %v936, 1
        %v945 = vrot.slane %v938, 6
        %v947 = vrot.slane %v938, 7
        %vm949 = vcmask 1040384
        %v950 = vsel %vm949, %v936, %v942
        %v951 = vsel %vm540, %v950, %v945
        %v952 = vsel %vm443, %v951, %v947
        %v953 = vld [vmem:[#allocation8] sm:$0xff]
        %v954 = vld [vmem:[#allocation8 + $0x8] sm:$0xff]
        %v955 = vld [vmem:[#allocation8 + $0x10] sm:$0xff]
        %v956 = vld [vmem:[#allocation8 + $0x18] sm:$0xff]
        %v957 = vrot.slane %v936, 2
        %v959 = vsel %vm949, %v942, %v957
        %v960 = vsel %vm540, %v959, %v947
        %v961 = vsel %vm443, %v960, %v938
        %s962 = scalar_lea.vmem [#allocation8], 32
        %v963 = vld [vmem:[%s962] sm:$0xff]
        %v964 = vld [vmem:[%s962 + $0x8] sm:$0xff]
        %v965 = vld [vmem:[%s962 + $0x10] sm:$0xff]
        %v966 = vld [vmem:[%s962 + $0x18] sm:$0xff]
        %v968 = vsel %vm476, %v961, 0
        %970 = vmatpush.msra.mxu0 0.0
        %971 = vmatpush.msra.mxu0 0.0
        %972 = vmatpush.msra.mxu0 0.0
        %973 = vmatpush.msra.mxu0 0.0
        %974 = vmatpush.msra.mxu0 0.0
        %975 = vmatpush.msra.mxu0 0.0
        %976 = vmatpush.msra.mxu0 0.0
        %977 = vmatpush.msra.mxu0 0.0
        %978 = vmatpush.msra.mxu0 0.0
        %979 = vmatpush.msra.mxu0 0.0
        %980 = vmatpush.msra.mxu0 0.0
        %981 = vmatpush.msra.mxu0 0.0
        %982 = vmatpush.msra.mxu0 %v966
        %983 = vmatpush.msra.mxu0 %v965
        %984 = vmatpush.msra.mxu0 %v964
        %985 = vmatpush.msra.mxu0 %v963
        %986 = vmatmul.f32.gmra.mxu0 %v968
        %v987 = vpop.f32.mrf.mxu0
        %v988 = vadd.f32 0.0, %v987
        %989 = vdwg.mxu0
        %v991 = vsel %vm476, %v952, 0
        %993 = vmatpush.msra.mxu0 0.0
        %994 = vmatpush.msra.mxu0 0.0
        %995 = vmatpush.msra.mxu0 0.0
        %996 = vmatpush.msra.mxu0 0.0
        %997 = vmatpush.msra.mxu0 0.0
        %998 = vmatpush.msra.mxu0 0.0
        %999 = vmatpush.msra.mxu0 0.0
        %1000 = vmatpush.msra.mxu0 0.0
        %1001 = vmatpush.msra.mxu0 0.0
        %1002 = vmatpush.msra.mxu0 0.0
        %1003 = vmatpush.msra.mxu0 0.0
        %1004 = vmatpush.msra.mxu0 0.0
        %1005 = vmatpush.msra.mxu0 %v956
        %1006 = vmatpush.msra.mxu0 %v955
        %1007 = vmatpush.msra.mxu0 %v954
        %1008 = vmatpush.msra.mxu0 %v953
        %1009 = vmatmul.f32.gmra.mxu0 %v991
        %v1010 = vpop.f32.mrf.mxu0
        %v1011 = vadd.f32 %v988, %v1010
        %1012 = vdwg.mxu0
        %v1013 = vrot.slane %v936, 3
        %v1015 = vrot.slane %v938, 1
        %v1017 = vsel %vm949, %v957, %v1013
        %v1018 = vsel %vm540, %v1017, %v938
        %v1019 = vsel %vm443, %v1018, %v1015
        %s1020 = scalar_lea.vmem [#allocation8], 64
        %v1021 = vld [vmem:[%s1020] sm:$0xff]
        %v1022 = vld [vmem:[%s1020 + $0x8] sm:$0xff]
        %v1023 = vld [vmem:[%s1020 + $0x10] sm:$0xff]
        %v1024 = vld [vmem:[%s1020 + $0x18] sm:$0xff]
        %v1026 = vsel %vm476, %v1019, 0
        %1028 = vmatpush.msra.mxu0 0.0
        %1029 = vmatpush.msra.mxu0 0.0
        %1030 = vmatpush.msra.mxu0 0.0
        %1031 = vmatpush.msra.mxu0 0.0
        %1032 = vmatpush.msra.mxu0 0.0
        %1033 = vmatpush.msra.mxu0 0.0
        %1034 = vmatpush.msra.mxu0 0.0
        %1035 = vmatpush.msra.mxu0 0.0
        %1036 = vmatpush.msra.mxu0 0.0
        %1037 = vmatpush.msra.mxu0 0.0
        %1038 = vmatpush.msra.mxu0 0.0
        %1039 = vmatpush.msra.mxu0 0.0
        %1040 = vmatpush.msra.mxu0 %v1024
        %1041 = vmatpush.msra.mxu0 %v1023
        %1042 = vmatpush.msra.mxu0 %v1022
        %1043 = vmatpush.msra.mxu0 %v1021
        %1044 = vmatmul.f32.gmra.mxu0 %v1026
        %v1045 = vpop.f32.mrf.mxu0
        %v1046 = vadd.f32 0.0, %v1045
        %1047 = vdwg.mxu0
        %v1048 = vadd.f32 %v1011, %v1046
        %v1050 = vrot.slane %v937, 1
        %v1053 = vrot.slane %v939, 6
        %v1055 = vrot.slane %v939, 7
        %v1057 = vsel %vm949, %v937, %v1050
        %v1058 = vsel %vm540, %v1057, %v1053
        %v1059 = vsel %vm443, %v1058, %v1055
        %s1060 = scalar_lea.vmem [#allocation8], 96
        %v1061 = vld [vmem:[%s1060] sm:$0xff]
        %v1062 = vld [vmem:[%s1060 + $0x8] sm:$0xff]
        %v1063 = vld [vmem:[%s1060 + $0x10] sm:$0xff]
        %v1064 = vld [vmem:[%s1060 + $0x18] sm:$0xff]
        %v1066 = vsel %vm476, %v1059, 0
        %1068 = vmatpush.msra.mxu0 0.0
        %1069 = vmatpush.msra.mxu0 0.0
        %1070 = vmatpush.msra.mxu0 0.0
        %1071 = vmatpush.msra.mxu0 0.0
        %1072 = vmatpush.msra.mxu0 0.0
        %1073 = vmatpush.msra.mxu0 0.0
        %1074 = vmatpush.msra.mxu0 0.0
        %1075 = vmatpush.msra.mxu0 0.0
        %1076 = vmatpush.msra.mxu0 0.0
        %1077 = vmatpush.msra.mxu0 0.0
        %1078 = vmatpush.msra.mxu0 0.0
        %1079 = vmatpush.msra.mxu0 0.0
        %1080 = vmatpush.msra.mxu0 %v1064
        %1081 = vmatpush.msra.mxu0 %v1063
        %1082 = vmatpush.msra.mxu0 %v1062
        %1083 = vmatpush.msra.mxu0 %v1061
        %1084 = vmatmul.f32.gmra.mxu0 %v1066
        %v1085 = vpop.f32.mrf.mxu0
        %v1086 = vadd.f32 0.0, %v1085
        %1087 = vdwg.mxu0
        %v1088 = vadd.f32 %v1048, %v1086
        %v1089 = vrot.slane %v937, 2
        %v1091 = vsel %vm949, %v1050, %v1089
        %v1092 = vsel %vm540, %v1091, %v1055
        %v1093 = vsel %vm443, %v1092, %v939
        %s1094 = scalar_lea.vmem [#allocation8], 128
        %v1095 = vld [vmem:[%s1094] sm:$0xff]
        %v1096 = vld [vmem:[%s1094 + $0x8] sm:$0xff]
        %v1097 = vld [vmem:[%s1094 + $0x10] sm:$0xff]
        %v1098 = vld [vmem:[%s1094 + $0x18] sm:$0xff]
        %v1100 = vsel %vm476, %v1093, 0
        %1102 = vmatpush.msra.mxu0 0.0
        %1103 = vmatpush.msra.mxu0 0.0
        %1104 = vmatpush.msra.mxu0 0.0
        %1105 = vmatpush.msra.mxu0 0.0
        %1106 = vmatpush.msra.mxu0 0.0
        %1107 = vmatpush.msra.mxu0 0.0
        %1108 = vmatpush.msra.mxu0 0.0
        %1109 = vmatpush.msra.mxu0 0.0
        %1110 = vmatpush.msra.mxu0 0.0
        %1111 = vmatpush.msra.mxu0 0.0
        %1112 = vmatpush.msra.mxu0 0.0
        %1113 = vmatpush.msra.mxu0 0.0
        %1114 = vmatpush.msra.mxu0 %v1098
        %1115 = vmatpush.msra.mxu0 %v1097
        %1116 = vmatpush.msra.mxu0 %v1096
        %1117 = vmatpush.msra.mxu0 %v1095
        %1118 = vmatmul.f32.gmra.mxu0 %v1100
        %v1119 = vpop.f32.mrf.mxu0
        %v1120 = vadd.f32 0.0, %v1119
        %1121 = vdwg.mxu0
        %v1122 = vadd.f32 %v1088, %v1120
        %v1123 = vrot.slane %v937, 3
        %v1125 = vrot.slane %v939, 1
        %v1127 = vsel %vm949, %v1089, %v1123
        %v1128 = vsel %vm540, %v1127, %v939
        %v1129 = vsel %vm443, %v1128, %v1125
        %s1130 = scalar_lea.vmem [#allocation8], 160
        %v1131 = vld [vmem:[%s1130] sm:$0xff]
        %v1132 = vld [vmem:[%s1130 + $0x8] sm:$0xff]
        %v1133 = vld [vmem:[%s1130 + $0x10] sm:$0xff]
        %v1134 = vld [vmem:[%s1130 + $0x18] sm:$0xff]
        %v1136 = vsel %vm476, %v1129, 0
        %1138 = vmatpush.msra.mxu0 0.0
        %1139 = vmatpush.msra.mxu0 0.0
        %1140 = vmatpush.msra.mxu0 0.0
        %1141 = vmatpush.msra.mxu0 0.0
        %1142 = vmatpush.msra.mxu0 0.0
        %1143 = vmatpush.msra.mxu0 0.0
        %1144 = vmatpush.msra.mxu0 0.0
        %1145 = vmatpush.msra.mxu0 0.0
        %1146 = vmatpush.msra.mxu0 0.0
        %1147 = vmatpush.msra.mxu0 0.0
        %1148 = vmatpush.msra.mxu0 0.0
        %1149 = vmatpush.msra.mxu0 0.0
        %1150 = vmatpush.msra.mxu0 %v1134
        %1151 = vmatpush.msra.mxu0 %v1133
        %1152 = vmatpush.msra.mxu0 %v1132
        %1153 = vmatpush.msra.mxu0 %v1131
        %1154 = vmatmul.f32.gmra.mxu0 %v1136
        %v1155 = vpop.f32.mrf.mxu0
        %v1156 = vadd.f32 0.0, %v1155
        %1157 = vdwg.mxu0
        %v1158 = vadd.f32 %v1122, %v1156
        %v1160 = vrot.slane %v940, 6
        %v1162 = vrot.slane %v940, 7
        %v1164 = vsel %vm949, %v938, %v1015
        %v1165 = vsel %vm540, %v1164, %v1160
        %v1166 = vsel %vm443, %v1165, %v1162
        %s1167 = scalar_lea.vmem [#allocation8], 192
        %v1168 = vld [vmem:[%s1167] sm:$0xff]
        %v1169 = vld [vmem:[%s1167 + $0x8] sm:$0xff]
        %v1170 = vld [vmem:[%s1167 + $0x10] sm:$0xff]
        %v1171 = vld [vmem:[%s1167 + $0x18] sm:$0xff]
        %v1173 = vsel %vm476, %v1166, 0
        %1175 = vmatpush.msra.mxu0 0.0
        %1176 = vmatpush.msra.mxu0 0.0
        %1177 = vmatpush.msra.mxu0 0.0
        %1178 = vmatpush.msra.mxu0 0.0
        %1179 = vmatpush.msra.mxu0 0.0
        %1180 = vmatpush.msra.mxu0 0.0
        %1181 = vmatpush.msra.mxu0 0.0
        %1182 = vmatpush.msra.mxu0 0.0
        %1183 = vmatpush.msra.mxu0 0.0
        %1184 = vmatpush.msra.mxu0 0.0
        %1185 = vmatpush.msra.mxu0 0.0
        %1186 = vmatpush.msra.mxu0 0.0
        %1187 = vmatpush.msra.mxu0 %v1171
        %1188 = vmatpush.msra.mxu0 %v1170
        %1189 = vmatpush.msra.mxu0 %v1169
        %1190 = vmatpush.msra.mxu0 %v1168
        %1191 = vmatmul.f32.gmra.mxu0 %v1173
        %v1192 = vpop.f32.mrf.mxu0
        %v1193 = vadd.f32 0.0, %v1192
        %1194 = vdwg.mxu0
        %v1195 = vadd.f32 %v1158, %v1193
        %v1196 = vrot.slane %v938, 2
        %v1198 = vsel %vm949, %v1015, %v1196
        %v1199 = vsel %vm540, %v1198, %v1162
        %v1200 = vsel %vm443, %v1199, %v940
        %s1201 = scalar_lea.vmem [#allocation8], 224
        %v1202 = vld [vmem:[%s1201] sm:$0xff]
        %v1203 = vld [vmem:[%s1201 + $0x8] sm:$0xff]
        %v1204 = vld [vmem:[%s1201 + $0x10] sm:$0xff]
        %v1205 = vld [vmem:[%s1201 + $0x18] sm:$0xff]
        %v1207 = vsel %vm476, %v1200, 0
        %1209 = vmatpush.msra.mxu0 0.0
        %1210 = vmatpush.msra.mxu0 0.0
        %1211 = vmatpush.msra.mxu0 0.0
        %1212 = vmatpush.msra.mxu0 0.0
        %1213 = vmatpush.msra.mxu0 0.0
        %1214 = vmatpush.msra.mxu0 0.0
        %1215 = vmatpush.msra.mxu0 0.0
        %1216 = vmatpush.msra.mxu0 0.0
        %1217 = vmatpush.msra.mxu0 0.0
        %1218 = vmatpush.msra.mxu0 0.0
        %1219 = vmatpush.msra.mxu0 0.0
        %1220 = vmatpush.msra.mxu0 0.0
        %1221 = vmatpush.msra.mxu0 %v1205
        %1222 = vmatpush.msra.mxu0 %v1204
        %1223 = vmatpush.msra.mxu0 %v1203
        %1224 = vmatpush.msra.mxu0 %v1202
        %1225 = vmatmul.f32.gmra.mxu0 %v1207
        %v1226 = vpop.f32.mrf.mxu0
        %v1227 = vadd.f32 0.0, %v1226
        %1228 = vdwg.mxu0
        %v1229 = vadd.f32 %v1195, %v1227
        %v1230 = vrot.slane %v938, 3
        %v1232 = vrot.slane %v940, 1
        %v1234 = vsel %vm949, %v1196, %v1230
        %v1235 = vsel %vm540, %v1234, %v940
        %v1236 = vsel %vm443, %v1235, %v1232
        %s1237 = scalar_lea.vmem [#allocation8], 256
        %v1238 = vld [vmem:[%s1237] sm:$0xff]
        %v1239 = vld [vmem:[%s1237 + $0x8] sm:$0xff]
        %v1240 = vld [vmem:[%s1237 + $0x10] sm:$0xff]
        %v1241 = vld [vmem:[%s1237 + $0x18] sm:$0xff]
        %v1243 = vsel %vm476, %v1236, 0
        %1245 = vmatpush.msra.mxu0 0.0
        %1246 = vmatpush.msra.mxu0 0.0
        %1247 = vmatpush.msra.mxu0 0.0
        %1248 = vmatpush.msra.mxu0 0.0
        %1249 = vmatpush.msra.mxu0 0.0
        %1250 = vmatpush.msra.mxu0 0.0
        %1251 = vmatpush.msra.mxu0 0.0
        %1252 = vmatpush.msra.mxu0 0.0
        %1253 = vmatpush.msra.mxu0 0.0
        %1254 = vmatpush.msra.mxu0 0.0
        %1255 = vmatpush.msra.mxu0 0.0
        %1256 = vmatpush.msra.mxu0 0.0
        %1257 = vmatpush.msra.mxu0 %v1241
        %1258 = vmatpush.msra.mxu0 %v1240
        %1259 = vmatpush.msra.mxu0 %v1239
        %1260 = vmatpush.msra.mxu0 %v1238
        %1261 = vmatmul.f32.gmra.mxu0 %v1243
        %v1262 = vpop.f32.mrf.mxu0
        %v1263 = vadd.f32 0.0, %v1262
        %1264 = vdwg.mxu0
        %v1265 = vadd.f32 %v1229, %v1263
        %v1266 = vperm.slane %v924, 0
        %v1267 = vmul.f32 %v1265, %v1266
        %v1268 = vperm.slane %v925, 0
        %v1269 = vadd.f32 %v1267, %v1268
        %vm1270 = vcmp.gt.f32.partialorder %v1269, 20.0
        %v1271 = vmin.f32 %v1269, 20.0
        %v1272 = vmul.f32 %v1271, 1.442695
        %v1273 = vpow.pop %v1272
        %v1274 = vadd.f32 %v1273, 1.0
        %v1275 = vlog2.pop %v1274
        %v1276 = vmul.f32 %v1275, 0.6931472
        %v1277 = vmul.f32 -0.5, %v1273
        %v1278 = vadd.f32 %v1277, 1.0
        %v1279 = vmul.f32 %v1278, %v1273
        %v1280 = vand.u32 2147483647, %v1273
        %vm1281 = vcmp.lt.f32.partialorder %v1280, 0.0004427343
        %v1282 = vsel %vm1281, %v1279, %v1276
        %v1283 = vsel %vm1270, %v1269, %v1282
        %v1284 = vtanh.pop %v1283
        %v1285 = vmul.f32 %v1269, %v1284
        %v1287 = vrot.slane %v1285, 2
        %v1289 = vld [vmem:[#allocation11 + $0x2] sm:$0x1]
        %v1290 = vld [vmem:[%s5 + $0x2] sm:$0x1]
        %1291 = vst.msk [vmem:[#allocation2] sm:$0x3f] %vm412, 0.0
        %1292 = vst.msk [vmem:[#allocation2 + $0x8] sm:$0x3f] %vm412, 0.0
        %1293 = vst.msk [vmem:[#allocation2 + $0x10] sm:$0x3f] %vm412, 0.0
        %1294 = vst.msk [vmem:[#allocation2 + $0x18] sm:$0x3f] %vm412, 0.0
        %1295 = vst.msk [vmem:[#allocation2 + $0x20] sm:$0x3f] %vm412, 0.0
        %1296 = vst.msk [vmem:[#allocation2 + $0x28] sm:$0x3f] %vm412, 0.0
        %vm1297 = vcmask 254976
        %1298 = vst.msk [vmem:[%s419 + $0x1] sm:$0x3] %vm1297, %v1285
        %1299 = vst.msk [vmem:[%s419 + $0x9] sm:$0x3] %vm1297, %v1287
        %v1300 = vld [vmem:[#allocation2] sm:$0xf]
        %v1301 = vld [vmem:[#allocation2 + $0x8] sm:$0xf]
        %v1302 = vld [vmem:[#allocation2 + $0x10] sm:$0xf]
        %v1303 = vld [vmem:[#allocation9] sm:$0xff]
        %v1304 = vld [vmem:[#allocation9 + $0x8] sm:$0xff]
        %v1305 = vld [vmem:[#allocation9 + $0x10] sm:$0xff]
        %v1306 = vld [vmem:[#allocation9 + $0x18] sm:$0xff]
        %s1307 = scalar_lea.vmem [#allocation9], 32
        %v1308 = vld [vmem:[%s1307] sm:$0xff]
        %v1309 = vld [vmem:[%s1307 + $0x8] sm:$0xff]
        %v1310 = vld [vmem:[%s1307 + $0x10] sm:$0xff]
        %v1311 = vld [vmem:[%s1307 + $0x18] sm:$0xff]
        %v1313 = vrot.slane %v1300, 1
        %v1314 = vsel %vm476, %v1313, 0
        %1316 = vmatpush.msra.mxu0 0.0
        %1317 = vmatpush.msra.mxu0 0.0
        %1318 = vmatpush.msra.mxu0 0.0
        %1319 = vmatpush.msra.mxu0 0.0
        %1320 = vmatpush.msra.mxu0 0.0
        %1321 = vmatpush.msra.mxu0 0.0
        %1322 = vmatpush.msra.mxu0 0.0
        %1323 = vmatpush.msra.mxu0 0.0
        %1324 = vmatpush.msra.mxu0 0.0
        %1325 = vmatpush.msra.mxu0 0.0
        %1326 = vmatpush.msra.mxu0 0.0
        %1327 = vmatpush.msra.mxu0 0.0
        %1328 = vmatpush.msra.mxu0 %v1311
        %1329 = vmatpush.msra.mxu0 %v1310
        %1330 = vmatpush.msra.mxu0 %v1309
        %1331 = vmatpush.msra.mxu0 %v1308
        %1332 = vmatmul.f32.gmra.mxu0 %v1314
        %v1333 = vpop.f32.mrf.mxu0
        %v1334 = vadd.f32 0.0, %v1333
        %1335 = vdwg.mxu0
        %v1336 = vsel %vm476, %v1300, 0
        %1338 = vmatpush.msra.mxu0 0.0
        %1339 = vmatpush.msra.mxu0 0.0
        %1340 = vmatpush.msra.mxu0 0.0
        %1341 = vmatpush.msra.mxu0 0.0
        %1342 = vmatpush.msra.mxu0 0.0
        %1343 = vmatpush.msra.mxu0 0.0
        %1344 = vmatpush.msra.mxu0 0.0
        %1345 = vmatpush.msra.mxu0 0.0
        %1346 = vmatpush.msra.mxu0 0.0
        %1347 = vmatpush.msra.mxu0 0.0
        %1348 = vmatpush.msra.mxu0 0.0
        %1349 = vmatpush.msra.mxu0 0.0
        %1350 = vmatpush.msra.mxu0 %v1306
        %1351 = vmatpush.msra.mxu0 %v1305
        %1352 = vmatpush.msra.mxu0 %v1304
        %1353 = vmatpush.msra.mxu0 %v1303
        %1354 = vmatmul.f32.gmra.mxu0 %v1336
        %v1355 = vpop.f32.mrf.mxu0
        %v1356 = vadd.f32 %v1334, %v1355
        %1357 = vdwg.mxu0
        %s1358 = scalar_lea.vmem [#allocation9], 64
        %v1359 = vld [vmem:[%s1358] sm:$0xff]
        %v1360 = vld [vmem:[%s1358 + $0x8] sm:$0xff]
        %v1361 = vld [vmem:[%s1358 + $0x10] sm:$0xff]
        %v1362 = vld [vmem:[%s1358 + $0x18] sm:$0xff]
        %v1363 = vrot.slane %v1300, 2
        %v1364 = vsel %vm476, %v1363, 0
        %1366 = vmatpush.msra.mxu0 0.0
        %1367 = vmatpush.msra.mxu0 0.0
        %1368 = vmatpush.msra.mxu0 0.0
        %1369 = vmatpush.msra.mxu0 0.0
        %1370 = vmatpush.msra.mxu0 0.0
        %1371 = vmatpush.msra.mxu0 0.0
        %1372 = vmatpush.msra.mxu0 0.0
        %1373 = vmatpush.msra.mxu0 0.0
        %1374 = vmatpush.msra.mxu0 0.0
        %1375 = vmatpush.msra.mxu0 0.0
        %1376 = vmatpush.msra.mxu0 0.0
        %1377 = vmatpush.msra.mxu0 0.0
        %1378 = vmatpush.msra.mxu0 %v1362
        %1379 = vmatpush.msra.mxu0 %v1361
        %1380 = vmatpush.msra.mxu0 %v1360
        %1381 = vmatpush.msra.mxu0 %v1359
        %1382 = vmatmul.f32.gmra.mxu0 %v1364
        %v1383 = vpop.f32.mrf.mxu0
        %v1384 = vadd.f32 0.0, %v1383
        %1385 = vdwg.mxu0
        %v1386 = vadd.f32 %v1356, %v1384
        %s1387 = scalar_lea.vmem [#allocation9], 96
        %v1388 = vld [vmem:[%s1387] sm:$0xff]
        %v1389 = vld [vmem:[%s1387 + $0x8] sm:$0xff]
        %v1390 = vld [vmem:[%s1387 + $0x10] sm:$0xff]
        %v1391 = vld [vmem:[%s1387 + $0x18] sm:$0xff]
        %v1393 = vsel %vm476, %v1301, 0
        %1395 = vmatpush.msra.mxu0 0.0
        %1396 = vmatpush.msra.mxu0 0.0
        %1397 = vmatpush.msra.mxu0 0.0
        %1398 = vmatpush.msra.mxu0 0.0
        %1399 = vmatpush.msra.mxu0 0.0
        %1400 = vmatpush.msra.mxu0 0.0
        %1401 = vmatpush.msra.mxu0 0.0
        %1402 = vmatpush.msra.mxu0 0.0
        %1403 = vmatpush.msra.mxu0 0.0
        %1404 = vmatpush.msra.mxu0 0.0
        %1405 = vmatpush.msra.mxu0 0.0
        %1406 = vmatpush.msra.mxu0 0.0
        %1407 = vmatpush.msra.mxu0 %v1391
        %1408 = vmatpush.msra.mxu0 %v1390
        %1409 = vmatpush.msra.mxu0 %v1389
        %1410 = vmatpush.msra.mxu0 %v1388
        %1411 = vmatmul.f32.gmra.mxu0 %v1393
        %v1412 = vpop.f32.mrf.mxu0
        %v1413 = vadd.f32 0.0, %v1412
        %1414 = vdwg.mxu0
        %v1415 = vadd.f32 %v1386, %v1413
        %s1416 = scalar_lea.vmem [#allocation9], 128
        %v1417 = vld [vmem:[%s1416] sm:$0xff]
        %v1418 = vld [vmem:[%s1416 + $0x8] sm:$0xff]
        %v1419 = vld [vmem:[%s1416 + $0x10] sm:$0xff]
        %v1420 = vld [vmem:[%s1416 + $0x18] sm:$0xff]
        %v1421 = vrot.slane %v1301, 1
        %v1422 = vsel %vm476, %v1421, 0
        %1424 = vmatpush.msra.mxu0 0.0
        %1425 = vmatpush.msra.mxu0 0.0
        %1426 = vmatpush.msra.mxu0 0.0
        %1427 = vmatpush.msra.mxu0 0.0
        %1428 = vmatpush.msra.mxu0 0.0
        %1429 = vmatpush.msra.mxu0 0.0
        %1430 = vmatpush.msra.mxu0 0.0
        %1431 = vmatpush.msra.mxu0 0.0
        %1432 = vmatpush.msra.mxu0 0.0
        %1433 = vmatpush.msra.mxu0 0.0
        %1434 = vmatpush.msra.mxu0 0.0
        %1435 = vmatpush.msra.mxu0 0.0
        %1436 = vmatpush.msra.mxu0 %v1420
        %1437 = vmatpush.msra.mxu0 %v1419
        %1438 = vmatpush.msra.mxu0 %v1418
        %1439 = vmatpush.msra.mxu0 %v1417
        %1440 = vmatmul.f32.gmra.mxu0 %v1422
        %v1441 = vpop.f32.mrf.mxu0
        %v1442 = vadd.f32 0.0, %v1441
        %1443 = vdwg.mxu0
        %v1444 = vadd.f32 %v1415, %v1442
        %s1445 = scalar_lea.vmem [#allocation9], 160
        %v1446 = vld [vmem:[%s1445] sm:$0xff]
        %v1447 = vld [vmem:[%s1445 + $0x8] sm:$0xff]
        %v1448 = vld [vmem:[%s1445 + $0x10] sm:$0xff]
        %v1449 = vld [vmem:[%s1445 + $0x18] sm:$0xff]
        %v1450 = vrot.slane %v1301, 2
        %v1451 = vsel %vm476, %v1450, 0
        %1453 = vmatpush.msra.mxu0 0.0
        %1454 = vmatpush.msra.mxu0 0.0
        %1455 = vmatpush.msra.mxu0 0.0
        %1456 = vmatpush.msra.mxu0 0.0
        %1457 = vmatpush.msra.mxu0 0.0
        %1458 = vmatpush.msra.mxu0 0.0
        %1459 = vmatpush.msra.mxu0 0.0
        %1460 = vmatpush.msra.mxu0 0.0
        %1461 = vmatpush.msra.mxu0 0.0
        %1462 = vmatpush.msra.mxu0 0.0
        %1463 = vmatpush.msra.mxu0 0.0
        %1464 = vmatpush.msra.mxu0 0.0
        %1465 = vmatpush.msra.mxu0 %v1449
        %1466 = vmatpush.msra.mxu0 %v1448
        %1467 = vmatpush.msra.mxu0 %v1447
        %1468 = vmatpush.msra.mxu0 %v1446
        %1469 = vmatmul.f32.gmra.mxu0 %v1451
        %v1470 = vpop.f32.mrf.mxu0
        %v1471 = vadd.f32 0.0, %v1470
        %1472 = vdwg.mxu0
        %v1473 = vadd.f32 %v1444, %v1471
        %s1474 = scalar_lea.vmem [#allocation9], 192
        %v1475 = vld [vmem:[%s1474] sm:$0xff]
        %v1476 = vld [vmem:[%s1474 + $0x8] sm:$0xff]
        %v1477 = vld [vmem:[%s1474 + $0x10] sm:$0xff]
        %v1478 = vld [vmem:[%s1474 + $0x18] sm:$0xff]
        %v1480 = vsel %vm476, %v1302, 0
        %1482 = vmatpush.msra.mxu0 0.0
        %1483 = vmatpush.msra.mxu0 0.0
        %1484 = vmatpush.msra.mxu0 0.0
        %1485 = vmatpush.msra.mxu0 0.0
        %1486 = vmatpush.msra.mxu0 0.0
        %1487 = vmatpush.msra.mxu0 0.0
        %1488 = vmatpush.msra.mxu0 0.0
        %1489 = vmatpush.msra.mxu0 0.0
        %1490 = vmatpush.msra.mxu0 0.0
        %1491 = vmatpush.msra.mxu0 0.0
        %1492 = vmatpush.msra.mxu0 0.0
        %1493 = vmatpush.msra.mxu0 0.0
        %1494 = vmatpush.msra.mxu0 %v1478
        %1495 = vmatpush.msra.mxu0 %v1477
        %1496 = vmatpush.msra.mxu0 %v1476
        %1497 = vmatpush.msra.mxu0 %v1475
        %1498 = vmatmul.f32.gmra.mxu0 %v1480
        %v1499 = vpop.f32.mrf.mxu0
        %v1500 = vadd.f32 0.0, %v1499
        %1501 = vdwg.mxu0
        %v1502 = vadd.f32 %v1473, %v1500
        %s1503 = scalar_lea.vmem [#allocation9], 224
        %v1504 = vld [vmem:[%s1503] sm:$0xff]
        %v1505 = vld [vmem:[%s1503 + $0x8] sm:$0xff]
        %v1506 = vld [vmem:[%s1503 + $0x10] sm:$0xff]
        %v1507 = vld [vmem:[%s1503 + $0x18] sm:$0xff]
        %v1508 = vrot.slane %v1302, 1
        %v1509 = vsel %vm476, %v1508, 0
        %1511 = vmatpush.msra.mxu0 0.0
        %1512 = vmatpush.msra.mxu0 0.0
        %1513 = vmatpush.msra.mxu0 0.0
        %1514 = vmatpush.msra.mxu0 0.0
        %1515 = vmatpush.msra.mxu0 0.0
        %1516 = vmatpush.msra.mxu0 0.0
        %1517 = vmatpush.msra.mxu0 0.0
        %1518 = vmatpush.msra.mxu0 0.0
        %1519 = vmatpush.msra.mxu0 0.0
        %1520 = vmatpush.msra.mxu0 0.0
        %1521 = vmatpush.msra.mxu0 0.0
        %1522 = vmatpush.msra.mxu0 0.0
        %1523 = vmatpush.msra.mxu0 %v1507
        %1524 = vmatpush.msra.mxu0 %v1506
        %1525 = vmatpush.msra.mxu0 %v1505
        %1526 = vmatpush.msra.mxu0 %v1504
        %1527 = vmatmul.f32.gmra.mxu0 %v1509
        %v1528 = vpop.f32.mrf.mxu0
        %v1529 = vadd.f32 0.0, %v1528
        %1530 = vdwg.mxu0
        %v1531 = vadd.f32 %v1502, %v1529
        %s1532 = scalar_lea.vmem [#allocation9], 256
        %v1533 = vld [vmem:[%s1532] sm:$0xff]
        %v1534 = vld [vmem:[%s1532 + $0x8] sm:$0xff]
        %v1535 = vld [vmem:[%s1532 + $0x10] sm:$0xff]
        %v1536 = vld [vmem:[%s1532 + $0x18] sm:$0xff]
        %v1537 = vrot.slane %v1302, 2
        %v1538 = vsel %vm476, %v1537, 0
        %1540 = vmatpush.msra.mxu0 0.0
        %1541 = vmatpush.msra.mxu0 0.0
        %1542 = vmatpush.msra.mxu0 0.0
        %1543 = vmatpush.msra.mxu0 0.0
        %1544 = vmatpush.msra.mxu0 0.0
        %1545 = vmatpush.msra.mxu0 0.0
        %1546 = vmatpush.msra.mxu0 0.0
        %1547 = vmatpush.msra.mxu0 0.0
        %1548 = vmatpush.msra.mxu0 0.0
        %1549 = vmatpush.msra.mxu0 0.0
        %1550 = vmatpush.msra.mxu0 0.0
        %1551 = vmatpush.msra.mxu0 0.0
        %1552 = vmatpush.msra.mxu0 %v1536
        %1553 = vmatpush.msra.mxu0 %v1535
        %1554 = vmatpush.msra.mxu0 %v1534
        %1555 = vmatpush.msra.mxu0 %v1533
        %1556 = vmatmul.f32.gmra.mxu0 %v1538
        %v1557 = vpop.f32.mrf.mxu0
        %v1558 = vadd.f32 0.0, %v1557
        %1559 = vdwg.mxu0
        %v1560 = vadd.f32 %v1531, %v1558
        %v1561 = vmul.f32 %v1560, %v1289
        %v1562 = vadd.f32 %v1561, %v1290
        %vm1563 = vcmp.gt.f32.partialorder %v1562, 20.0
        %v1564 = vmin.f32 %v1562, 20.0
        %v1565 = vmul.f32 %v1564, 1.442695
        %v1566 = vpow.pop %v1565
        %v1567 = vadd.f32 %v1566, 1.0
        %v1568 = vlog2.pop %v1567
        %v1569 = vmul.f32 %v1568, 0.6931472
        %v1570 = vmul.f32 -0.5, %v1566
        %v1571 = vadd.f32 %v1570, 1.0
        %v1572 = vmul.f32 %v1571, %v1566
        %v1573 = vand.u32 2147483647, %v1566
        %vm1574 = vcmp.lt.f32.partialorder %v1573, 0.0004427343
        %v1575 = vsel %vm1574, %v1572, %v1569
        %v1576 = vsel %vm1563, %v1562, %v1575
        %v1577 = vtanh.pop %v1576
        %v1578 = vmul.f32 %v1562, %v1577
        %v1579 = vld [vmem:[#allocation12] sm:$0xff]
        %v1580 = vld [vmem:[#allocation12 + $0x8] sm:$0xff]
        %v1581 = vld [vmem:[#allocation12 + $0x10] sm:$0xff]
        %v1582 = vld [vmem:[#allocation12 + $0x18] sm:$0xff]
        %v1583 = vld [vmem:[%s7] sm:$0x1]
        %v1585 = vsel %vm476, %v1578, 0
        %1587 = vmatpush.msra.mxu0 0.0
        %1588 = vmatpush.msra.mxu0 0.0
        %1589 = vmatpush.msra.mxu0 0.0
        %1590 = vmatpush.msra.mxu0 0.0
        %1591 = vmatpush.msra.mxu0 0.0
        %1592 = vmatpush.msra.mxu0 0.0
        %1593 = vmatpush.msra.mxu0 0.0
        %1594 = vmatpush.msra.mxu0 0.0
        %1595 = vmatpush.msra.mxu0 0.0
        %1596 = vmatpush.msra.mxu0 0.0
        %1597 = vmatpush.msra.mxu0 0.0
        %1598 = vmatpush.msra.mxu0 0.0
        %1599 = vmatpush.msra.mxu0 %v1582
        %1600 = vmatpush.msra.mxu0 %v1581
        %1601 = vmatpush.msra.mxu0 %v1580
        %1602 = vmatpush.msra.mxu0 %v1579
        %1603 = vmatmul.f32.gmra.mxu0 %v1585
        %v1604 = vpop.f32.mrf.mxu0
        %v1605 = vadd.f32 %v1583, %v1604
        %1606 = vdwg.mxu0
        %vm1607 = vcmask 253952
        %1608 = vst.msk [vmem:[%s405] sm:$0x1] %vm1607, %v1605
        %s1609 = sand.u32 %s209, 1
        %s1610 = scalar_lea.sflag [#allocation5], %s1609
        %s1611 = sand.u32 %s209, 1
        %s1612 = scalar_lea.vmem [#allocation14], %s1611
        // Predicated region
        $region77: #{tpu_custom_call.1} parent=51 // pred_check
          %p1613 = pneg %p219
        $region78: #{tpu_custom_call.1} parent=51 // pred_check_branch
          %1615 = sbr.rel (%p1613) target = $region80
        $region79: #{tpu_custom_call.1} parent=51 // pred_region
          %1617 = vsyncadd %s1610, 0
          %s1618 = scalar_lea.hbm %s8, %s28
          %s1620 = sshll.u32 %s1612, 4
          %s1621 = int_to_ptr.vmem [resolvable:$true] %s1620
          %s1622 = sshll.u32 %s1618, 4
          %s1623 = int_to_ptr.hbm [resolvable:$true] %s1622
          %1625 = dma.vmem_to_hbm [thread:$0]  %s1621, 16, %s1623, %s1610
        $region80: #{tpu_custom_call.1} parent=51 // pred_fallthru
          _
      $region52: #{tpu_custom_call.1} parent=5 // pred_fallthru
        _
      %p1626 = scmp.le.s32.totalorder 2, %s23
      // Predicated region
      $region81: #{tpu_custom_call.1} parent=5 // pred_check
        %p1627 = pneg %p1626
      $region82: #{tpu_custom_call.1} parent=5 // pred_check_branch
        %1629 = sbr.rel (%p1627) target = $region84
      $region83: #{tpu_custom_call.1} parent=5 // pred_region
        %s1630 = ssub.s32 %s23, 2
        // Predicated region
        $region85: #{tpu_custom_call.1} parent=83 // pred_check
          %p1631 = pneg %p225
        $region86: #{tpu_custom_call.1} parent=83 // pred_check_branch
          %1633 = sbr.rel (%p1631) target = $region88
        $region87: #{tpu_custom_call.1} parent=83 // pred_region
          %s1634 = sand.u32 %s210, 1
          %s1635 = scalar_lea.sflag [#allocation5], %s1634
          %s1636 = sand.u32 %s210, 1
          %s1637 = scalar_lea.vmem [#allocation14], %s1636
          %1639 = dma.done %s1635, 16
        $region88: #{tpu_custom_call.1} parent=83 // pred_fallthru
          _
      $region84: #{tpu_custom_call.1} parent=5 // pred_fallthru
        _
    $region6: #{tpu_custom_call.1} parent=1 // loop_footer
      %s27 = sadd.s32 1, %s23
    $region7: #{tpu_custom_call.1} parent=1 // loop_footer_branch
      %22 = sbr.rel target = $region3
    $region8: #{tpu_custom_call.1} parent=1 // loop_exit
      _
    %1640 = vsyncpa [#allocation4], 1
    %s1641 = scalar_lea.sflag [#allocation4], 1
    %1642 = vsyncpa %s1641, 1
    %1643 = vsyncpa [#allocation7], 1
    %1644 = vsyncpa [#allocation10], 1
    %1645 = vsyncpa [#allocation13], 1
    %1646 = vsyncpa [#allocation5], 1
    %s1647 = scalar_lea.sflag [#allocation5], 1
    %1648 = vsyncpa %s1647, 1

</llo_original>
